<compile_context>
chip_gen: v5e
topology: v5e:2x2
jax: 0.10.0
libtpu: 0.0.40
codegen_flags: <defaults>
</compile_context>

<pallas_src>
import jax
import jax.numpy as jnp
from jax import lax
from jax.experimental import pallas as pl
from jax.experimental.pallas import tpu as pltpu

BN_EPS = 1e-5
NEG = -1e30          # max-aggregation sentinel; kept in f32, never cast to bf16
CHUNK = 8            # source nodes per aggregation step (one f32 sublane group)


def _round_up(x, m):
    return (x + m - 1) // m * m


def gin_layer_kernel(nvalid_ref,            # (B,) int32 in SMEM (scalar prefetch)
                     adj_ref,               # (n_chunks, Np, 8) int8, adj[c][i,k] = edge (8c+k)->i
                     x_ref,                 # (Np, Fin_p) f32
                     w1_ref, w2_ref,        # (Fin_p, Fp) / (Fp, Fp) bf16
                     vec_ref,               # (8, Fp) f32: b1,g1,be1,b2,g2,be2,g3,be3
                     o_ref):                # (Np, Fp) f32
    n_nodes, fin = x_ref.shape
    n_chunks = adj_ref.shape[0]

    x = x_ref[...]
    neg = jnp.float32(NEG)

    # ---- GIN max-aggregation over in-neighbours, 8 source nodes per step ----
    def chunk_body(c, agg):
        j0 = pl.multiple_of(c * CHUNK, CHUNK)
        adj_blk = adj_ref[c].astype(jnp.float32)            # (Np, 8)
        x_blk = x_ref[pl.ds(j0, CHUNK), :]                  # (8, Fin_p)
        cand = jnp.where(adj_blk[:, :, None] > 0.0,         # (Np, 8, Fin_p)
                         x_blk[None, :, :], neg)
        return jnp.maximum(agg, jnp.max(cand, axis=1))

    agg = lax.fori_loop(0, n_chunks, chunk_body,
                        jnp.full((n_nodes, fin), neg, jnp.float32),
                        unroll=True)
    agg = jnp.where(agg > jnp.float32(0.5 * NEG), agg, 0.0)  # zero-in-degree -> 0
    h = x + agg                                              # (1 + eps) * x + agg, eps = 0

    # ---- training-mode BatchNorm statistics over valid (non-padded) nodes ----
    nv = nvalid_ref[pl.program_id(0)]
    valid = (lax.broadcasted_iota(jnp.int32, (n_nodes, 1), 0) < nv).astype(jnp.float32)
    inv_n = 1.0 / nv.astype(jnp.float32)

    def bn_train(z, gamma, beta):
        mean = jnp.sum(z * valid, axis=0, keepdims=True) * inv_n
        d = (z - mean) * valid
        var = jnp.sum(d * d, axis=0, keepdims=True) * inv_n   # biased, like PyTorch train
        return gamma * (z - mean) * lax.rsqrt(var + BN_EPS) + beta

    b1, g1, be1 = vec_ref[0:1, :], vec_ref[1:2, :], vec_ref[2:3, :]
    b2, g2, be2 = vec_ref[3:4, :], vec_ref[4:5, :], vec_ref[5:6, :]
    g3, be3 = vec_ref[6:7, :], vec_ref[7:8, :]

    # ---- GINNodeFunc: Linear -> BN -> ReLU -> Linear -> BN -> ReLU -----------
    # bf16 operands on the MXU, f32 accumulation; BN / ReLU stay f32 on the VPU.
    h1 = jnp.dot(h.astype(jnp.bfloat16), w1_ref[...],
                 preferred_element_type=jnp.float32) + b1
    h1 = jnp.maximum(bn_train(h1, g1, be1), 0.0)
    h2 = jnp.dot(h1.astype(jnp.bfloat16), w2_ref[...],
                 preferred_element_type=jnp.float32) + b2
    h2 = jnp.maximum(bn_train(h2, g2, be2), 0.0)

    # ---- outer BatchNorm1d ----------------------------------------------------
    # TODO(synk): nn.Dropout(0.1) in train mode needs a PyTorch-matching RNG mask;
    # applied as identity (eval-mode dropout) here.
    o_ref[...] = bn_train(h2, g3, be3)


def gin_layer(adj, feats, params):
    """adj: (B, N, N) {0,1} int, adj[b,i,j]=1 means edge j->i.  feats: (B, N, Fin) f32."""
    (w1, b1, g1, be1, w2, b2, g2, be2, g3, be3) = params
    B, N, fin = feats.shape
    fout = w1.shape[1]

    n_p = _round_up(N, CHUNK)
    fin_p = _round_up(max(fin, 128), 128)      # lane-dense input features
    fout_p = _round_up(max(fout, 128), 128)    # lane-dense output channels
    n_chunks = n_p // CHUNK

    # ---- pad + relayout inputs (outside the kernel) ----
    x_p = jnp.zeros((B, n_p, fin_p), jnp.float32).at[:, :N, :fin].set(feats)
    adj_p = jnp.zeros((B, n_p, n_p), jnp.int8).at[:, :N, :N].set(adj.astype(jnp.int8))
    # (B, Np, Np) -> (B, n_chunks, Np, 8): chunk c holds source columns [8c, 8c+8)
    adj_r = adj_p.reshape(B, n_p, n_chunks, CHUNK).transpose(0, 2, 1, 3)

    # bf16 MXU weights, zero-padded to lane-dense shapes
    w1_p = jnp.zeros((fin_p, fout_p), jnp.float32).at[:fin, :fout].set(w1).astype(jnp.bfloat16)
    w2_p = jnp.zeros((fout_p, fout_p), jnp.float32).at[:fout, :fout].set(w2).astype(jnp.bfloat16)

    # pack the 8 per-channel vectors into one (8, Fp) array -> a single DMA
    vecs = jnp.concatenate([b1, g1, be1, b2, g2, be2, g3, be3], axis=0)     # (8, fout)
    vec_p = jnp.zeros((8, fout_p), jnp.float32).at[:, :fout].set(vecs)

    n_valid = jnp.full((B,), N, jnp.int32)

    grid_spec = pltpu.PrefetchScalarGridSpec(
        num_scalar_prefetch=1,
        grid=(B,),
        in_specs=[
            pl.BlockSpec((None, n_chunks, n_p, CHUNK), lambda b, nv: (b, 0, 0, 0)),
            pl.BlockSpec((None, n_p, fin_p), lambda b, nv: (b, 0, 0)),
            # constant index_map -> weights / packed vectors stay VMEM-resident
            pl.BlockSpec((fin_p, fout_p), lambda b, nv: (0, 0)),
            pl.BlockSpec((fout_p, fout_p), lambda b, nv: (0, 0)),
            pl.BlockSpec((8, fout_p), lambda b, nv: (0, 0)),
        ],
        out_specs=pl.BlockSpec((None, n_p, fout_p), lambda b, nv: (b, 0, 0)),
    )

    out = pl.pallas_call(
        gin_layer_kernel,
        out_shape=jax.ShapeDtypeStruct((B, n_p, fout_p), jnp.float32),
        grid_spec=grid_spec,
        compiler_params=pltpu.CompilerParams(
            dimension_semantics=("parallel",),        # graphs are independent (2 TCs on v7x)
            vmem_limit_bytes=32 * 1024 * 1024),       # bounded for v7x's 64 MiB VMEM
    )(n_valid, adj_r, x_p, w1_p, w2_p, vec_p)

    return out[:, :N, :fout]


def gin_layer_reference(adj, feats, params):
    """Pure-JAX reference of the same forward pass (mirrors the bf16 MXU operands)."""
    (w1, b1, g1, be1, w2, b2, g2, be2, g3, be3) = params
    adjf = adj.astype(jnp.float32)
    masked = jnp.where(adjf[:, :, :, None] > 0.0, feats[:, None, :, :], NEG)
    agg = jnp.max(masked, axis=2)
    deg = jnp.sum(adjf, axis=2, keepdims=True)
    agg = jnp.where(deg > 0.0, agg, 0.0)
    h = feats + agg

    def bn(z, gamma, beta):
        mean = jnp.mean(z, axis=1, keepdims=True)
        var = jnp.mean((z - mean) ** 2, axis=1, keepdims=True)
        return gamma * (z - mean) * lax.rsqrt(var + BN_EPS) + beta

    def dot_bf16(a, w):
        return jnp.dot(a.astype(jnp.bfloat16), w.astype(jnp.bfloat16),
                       preferred_element_type=jnp.float32)

    h1 = jnp.maximum(bn(dot_bf16(h, w1) + b1, g1, be1), 0.0)
    h2 = jnp.maximum(bn(dot_bf16(h1, w2) + b2, g2, be2), 0.0)
    return bn(h2, g3, be3)


def init_params(key, in_feats, out_feats):
    k1, k2, k3, k4 = jax.random.split(key, 4)
    lim1 = 1.0 / jnp.sqrt(in_feats)
    lim2 = 1.0 / jnp.sqrt(out_feats)
    # Linear weights stored transposed ((in, out)) so the kernel does x @ W.
    w1 = jax.random.uniform(k1, (in_feats, out_feats), jnp.float32, -lim1, lim1)
    b1 = jax.random.uniform(k2, (1, out_feats), jnp.float32, -lim1, lim1)
    w2 = jax.random.uniform(k3, (out_feats, out_feats), jnp.float32, -lim2, lim2)
    b2 = jax.random.uniform(k4, (1, out_feats), jnp.float32, -lim2, lim2)
    # BatchNorm affine params at PyTorch defaults (gamma=1, beta=0).
    ones = jnp.ones((1, out_feats), jnp.float32)
    zeros = jnp.zeros((1, out_feats), jnp.float32)
    return (w1, b1, ones, zeros, w2, b2, ones, zeros, ones, zeros)


if __name__ == "__main__":
    B, N, IN_FEATS, OUT_FEATS = 2, 12, 16, 32   # N=12 exercises the node-padding path

    key = jax.random.PRNGKey(0)
    k_adj, k_feat, k_par = jax.random.split(key, 3)

    adj = (jax.random.uniform(k_adj, (B, N, N)) < 0.4).astype(jnp.int8)
    feats = jax.random.normal(k_feat, (B, N, IN_FEATS), jnp.float32)
    params = init_params(k_par, IN_FEATS, OUT_FEATS)

    out = gin_layer(adj, feats, params)
    out = jax.block_until_ready(out)

    ref = gin_layer_reference(adj, feats, params)
    assert out.shape == (B, N, OUT_FEATS)
    assert jnp.allclose(out, ref, atol=1e-2, rtol=1e-2), "kernel/reference mismatch"

    print("KERNEL_OK")
</pallas_src>

<mosaic_0001>
module attributes {stable_mosaic.version = 11 : i64} {
  func.func @gin_layer_kernel(%arg0: i32, %arg1: memref<2xi32, #tpu.memory_space<smem>>, %arg2: memref<1x2x16x8xi8, #tpu.memory_space<vmem>>, %arg3: memref<1x16x128xf32, #tpu.memory_space<vmem>>, %arg4: memref<128x128xbf16, #tpu.memory_space<vmem>>, %arg5: memref<128x128xbf16, #tpu.memory_space<vmem>>, %arg6: memref<8x128xf32, #tpu.memory_space<vmem>>, %arg7: memref<1x16x128xf32, #tpu.memory_space<vmem>>) attributes {dimension_semantics = [#tpu.dimension_semantics<parallel>], iteration_bounds = array<i64: 2>, scalar_prefetch = 1 : i64, scratch_operands = 0 : i64, tpu.core_type = #tpu.core_type<tc>, window_params = [{transform_indices = @transform_0, window_bounds = array<i64: 1, 2, 16, 8>}, {transform_indices = @transform_1, window_bounds = array<i64: 1, 16, 128>}, {pipeline_mode = #tpu.pipeline_mode<synchronous>, transform_indices = @transform_2, window_bounds = array<i64: 128, 128>}, {pipeline_mode = #tpu.pipeline_mode<synchronous>, transform_indices = @transform_3, window_bounds = array<i64: 128, 128>}, {pipeline_mode = #tpu.pipeline_mode<synchronous>, transform_indices = @transform_4, window_bounds = array<i64: 8, 128>}, {transform_indices = @transform_5, window_bounds = array<i64: 1, 16, 128>}]} {
    %c0 = arith.constant 0 : index
    %c0_0 = arith.constant 0 : index
    %c0_1 = arith.constant 0 : index
    %0 = vector.load %arg3[%c0, %c0_0, %c0_1] : memref<1x16x128xf32, #tpu.memory_space<vmem>>, vector<1x16x128xf32>
    %1 = vector.shape_cast %0 : vector<1x16x128xf32> to vector<16x128xf32>
    %cst = arith.constant -1.000000e+30 : f32
    %2 = vector.broadcast %cst : f32 to vector<16x128xf32>
    %cst_2 = arith.constant -1.000000e+30 : f32
    %c0_i32 = arith.constant 0 : i32
    %c8_i32 = arith.constant 8 : i32
    %3 = arith.muli %c0_i32, %c8_i32 : i32
    %4 = tpu.assume_multiple %3, 8 : i32
    %c0_3 = arith.constant 0 : index
    %5 = arith.index_cast %c0_i32 : i32 to index
    %c0_4 = arith.constant 0 : index
    %c0_5 = arith.constant 0 : index
    %6 = vector.load %arg2[%c0_3, %5, %c0_4, %c0_5] : memref<1x2x16x8xi8, #tpu.memory_space<vmem>>, vector<1x1x16x8xi8>
    %7 = vector.shape_cast %6 : vector<1x1x16x8xi8> to vector<16x8xi8>
    %8 = arith.sitofp %7 : vector<16x8xi8> to vector<16x8xf32>
    %c0_6 = arith.constant 0 : index
    %9 = arith.index_cast %4 : i32 to index
    %c0_7 = arith.constant 0 : index
    %10 = vector.load %arg3[%c0_6, %9, %c0_7] : memref<1x16x128xf32, #tpu.memory_space<vmem>>, vector<1x8x128xf32>
    %11 = vector.shape_cast %10 : vector<1x8x128xf32> to vector<8x128xf32>
    %12 = vector.shape_cast %8 : vector<16x8xf32> to vector<16x8x1xf32>
    %cst_8 = arith.constant 0.000000e+00 : f32
    %13 = vector.broadcast %cst_8 : f32 to vector<16x8x1xf32>
    %14 = arith.cmpf ogt, %12, %13 : vector<16x8x1xf32>
    %15 = vector.shape_cast %11 : vector<8x128xf32> to vector<1x8x128xf32>
    %16 = vector.shape_cast %14 : vector<16x8x1xi1> to vector<16x8x1xi1>
    %17 = vector.broadcast %16 : vector<16x8x1xi1> to vector<16x8x128xi1>
    %18 = vector.shape_cast %15 : vector<1x8x128xf32> to vector<1x8x128xf32>
    %19 = vector.broadcast %18 : vector<1x8x128xf32> to vector<16x8x128xf32>
    %20 = vector.broadcast %cst_2 : f32 to vector<16x8x128xf32>
    %21 = arith.select %17, %19, %20 : vector<16x8x128xi1>, vector<16x8x128xf32>
    %cst_9 = arith.constant dense<0xFF800000> : vector<16x128xf32>
    %22 = vector.multi_reduction <maximumf>, %21, %cst_9 [1] : vector<16x8x128xf32> to vector<16x128xf32>
    %23 = arith.maximumf %2, %22 : vector<16x128xf32>
    %c1_i32 = arith.constant 1 : i32
    %c8_i32_10 = arith.constant 8 : i32
    %24 = arith.muli %c1_i32, %c8_i32_10 : i32
    %25 = tpu.assume_multiple %24, 8 : i32
    %c0_11 = arith.constant 0 : index
    %26 = arith.index_cast %c1_i32 : i32 to index
    %c0_12 = arith.constant 0 : index
    %c0_13 = arith.constant 0 : index
    %27 = vector.load %arg2[%c0_11, %26, %c0_12, %c0_13] : memref<1x2x16x8xi8, #tpu.memory_space<vmem>>, vector<1x1x16x8xi8>
    %28 = vector.shape_cast %27 : vector<1x1x16x8xi8> to vector<16x8xi8>
    %29 = arith.sitofp %28 : vector<16x8xi8> to vector<16x8xf32>
    %c0_14 = arith.constant 0 : index
    %30 = arith.index_cast %25 : i32 to index
    %c0_15 = arith.constant 0 : index
    %31 = vector.load %arg3[%c0_14, %30, %c0_15] : memref<1x16x128xf32, #tpu.memory_space<vmem>>, vector<1x8x128xf32>
    %32 = vector.shape_cast %31 : vector<1x8x128xf32> to vector<8x128xf32>
    %33 = vector.shape_cast %29 : vector<16x8xf32> to vector<16x8x1xf32>
    %cst_16 = arith.constant 0.000000e+00 : f32
    %34 = vector.broadcast %cst_16 : f32 to vector<16x8x1xf32>
    %35 = arith.cmpf ogt, %33, %34 : vector<16x8x1xf32>
    %36 = vector.shape_cast %32 : vector<8x128xf32> to vector<1x8x128xf32>
    %37 = vector.shape_cast %35 : vector<16x8x1xi1> to vector<16x8x1xi1>
    %38 = vector.broadcast %37 : vector<16x8x1xi1> to vector<16x8x128xi1>
    %39 = vector.shape_cast %36 : vector<1x8x128xf32> to vector<1x8x128xf32>
    %40 = vector.broadcast %39 : vector<1x8x128xf32> to vector<16x8x128xf32>
    %41 = vector.broadcast %cst_2 : f32 to vector<16x8x128xf32>
    %42 = arith.select %38, %40, %41 : vector<16x8x128xi1>, vector<16x8x128xf32>
    %cst_17 = arith.constant dense<0xFF800000> : vector<16x128xf32>
    %43 = vector.multi_reduction <maximumf>, %42, %cst_17 [1] : vector<16x8x128xf32> to vector<16x128xf32>
    %44 = arith.maximumf %23, %43 : vector<16x128xf32>
    %c2_i32 = arith.constant 2 : i32
    %cst_18 = arith.constant -5.000000e+29 : f32
    %45 = vector.broadcast %cst_18 : f32 to vector<16x128xf32>
    %46 = arith.cmpf ogt, %44, %45 : vector<16x128xf32>
    %cst_19 = arith.constant 0.000000e+00 : f32
    %47 = vector.broadcast %cst_19 : f32 to vector<16x128xf32>
    %48 = arith.select %46, %44, %47 : vector<16x128xi1>, vector<16x128xf32>
    %49 = arith.addf %1, %48 : vector<16x128xf32>
    %50 = arith.index_cast %arg0 : i32 to index
    %51 = memref.load %arg1[%50] : memref<2xi32, #tpu.memory_space<smem>>
    %52 = tpu.iota {dimensions = array<i32: 0>} : vector<16x1xi32>
    %53 = vector.broadcast %51 : i32 to vector<16x1xi32>
    %54 = arith.cmpi slt, %52, %53 : vector<16x1xi32>
    %55 = arith.extui %54 : vector<16x1xi1> to vector<16x1xi32>
    %56 = arith.sitofp %55 : vector<16x1xi32> to vector<16x1xf32>
    %57 = arith.sitofp %51 : i32 to f32
    %cst_20 = arith.constant 1.000000e+00 : f32
    %58 = arith.divf %cst_20, %57 : f32
    %c0_21 = arith.constant 0 : index
    %c0_22 = arith.constant 0 : index
    %59 = vector.load %arg6[%c0_21, %c0_22] : memref<8x128xf32, #tpu.memory_space<vmem>>, vector<1x128xf32>
    %c1 = arith.constant 1 : index
    %c0_23 = arith.constant 0 : index
    %60 = vector.load %arg6[%c1, %c0_23] : memref<8x128xf32, #tpu.memory_space<vmem>>, vector<1x128xf32>
    %c2 = arith.constant 2 : index
    %c0_24 = arith.constant 0 : index
    %61 = vector.load %arg6[%c2, %c0_24] : memref<8x128xf32, #tpu.memory_space<vmem>>, vector<1x128xf32>
    %c3 = arith.constant 3 : index
    %c0_25 = arith.constant 0 : index
    %62 = vector.load %arg6[%c3, %c0_25] : memref<8x128xf32, #tpu.memory_space<vmem>>, vector<1x128xf32>
    %c4 = arith.constant 4 : index
    %c0_26 = arith.constant 0 : index
    %63 = vector.load %arg6[%c4, %c0_26] : memref<8x128xf32, #tpu.memory_space<vmem>>, vector<1x128xf32>
    %c5 = arith.constant 5 : index
    %c0_27 = arith.constant 0 : index
    %64 = vector.load %arg6[%c5, %c0_27] : memref<8x128xf32, #tpu.memory_space<vmem>>, vector<1x128xf32>
    %c6 = arith.constant 6 : index
    %c0_28 = arith.constant 0 : index
    %65 = vector.load %arg6[%c6, %c0_28] : memref<8x128xf32, #tpu.memory_space<vmem>>, vector<1x128xf32>
    %c7 = arith.constant 7 : index
    %c0_29 = arith.constant 0 : index
    %66 = vector.load %arg6[%c7, %c0_29] : memref<8x128xf32, #tpu.memory_space<vmem>>, vector<1x128xf32>
    %67 = arith.truncf %49 : vector<16x128xf32> to vector<16x128xbf16>
    %c0_30 = arith.constant 0 : index
    %c0_31 = arith.constant 0 : index
    %68 = vector.load %arg4[%c0_30, %c0_31] : memref<128x128xbf16, #tpu.memory_space<vmem>>, vector<128x128xbf16>
    %cst_32 = arith.constant dense<0.000000e+00> : vector<16x128xf32>
    %69 = tpu.matmul %67, %68, %cst_32 {dimension_numbers = #tpu.dot_dimension_numbers<[1], [0], [0], [1], [0, 0, 1, 1], [], []>} : vector<16x128xbf16>, vector<128x128xbf16>, vector<16x128xf32> -> vector<16x128xf32>
    %70 = vector.broadcast %59 : vector<1x128xf32> to vector<16x128xf32>
    %71 = arith.addf %69, %70 : vector<16x128xf32>
    %72 = vector.broadcast %56 : vector<16x1xf32> to vector<16x128xf32>
    %73 = arith.mulf %71, %72 : vector<16x128xf32>
    %cst_33 = arith.constant dense<0.000000e+00> : vector<128xf32>
    %74 = vector.multi_reduction <add>, %73, %cst_33 [0] : vector<16x128xf32> to vector<128xf32>
    %75 = vector.shape_cast %74 : vector<128xf32> to vector<1x128xf32>
    %76 = vector.broadcast %58 : f32 to vector<1x128xf32>
    %77 = arith.mulf %75, %76 : vector<1x128xf32>
    %78 = vector.broadcast %77 : vector<1x128xf32> to vector<16x128xf32>
    %79 = arith.subf %71, %78 : vector<16x128xf32>
    %80 = vector.broadcast %56 : vector<16x1xf32> to vector<16x128xf32>
    %81 = arith.mulf %79, %80 : vector<16x128xf32>
    %82 = arith.mulf %81, %81 : vector<16x128xf32>
    %cst_34 = arith.constant dense<0.000000e+00> : vector<128xf32>
    %83 = vector.multi_reduction <add>, %82, %cst_34 [0] : vector<16x128xf32> to vector<128xf32>
    %84 = vector.shape_cast %83 : vector<128xf32> to vector<1x128xf32>
    %85 = vector.broadcast %58 : f32 to vector<1x128xf32>
    %86 = arith.mulf %84, %85 : vector<1x128xf32>
    %87 = vector.broadcast %77 : vector<1x128xf32> to vector<16x128xf32>
    %88 = arith.subf %71, %87 : vector<16x128xf32>
    %89 = vector.broadcast %60 : vector<1x128xf32> to vector<16x128xf32>
    %90 = arith.mulf %89, %88 : vector<16x128xf32>
    %cst_35 = arith.constant 9.99999974E-6 : f32
    %91 = vector.broadcast %cst_35 : f32 to vector<1x128xf32>
    %92 = arith.addf %86, %91 : vector<1x128xf32>
    %93 = math.rsqrt %92 : vector<1x128xf32>
    %94 = vector.broadcast %93 : vector<1x128xf32> to vector<16x128xf32>
    %95 = arith.mulf %90, %94 : vector<16x128xf32>
    %96 = vector.broadcast %61 : vector<1x128xf32> to vector<16x128xf32>
    %97 = arith.addf %95, %96 : vector<16x128xf32>
    %cst_36 = arith.constant 0.000000e+00 : f32
    %98 = vector.broadcast %cst_36 : f32 to vector<16x128xf32>
    %99 = arith.maximumf %97, %98 : vector<16x128xf32>
    %100 = arith.truncf %99 : vector<16x128xf32> to vector<16x128xbf16>
    %c0_37 = arith.constant 0 : index
    %c0_38 = arith.constant 0 : index
    %101 = vector.load %arg5[%c0_37, %c0_38] : memref<128x128xbf16, #tpu.memory_space<vmem>>, vector<128x128xbf16>
    %cst_39 = arith.constant dense<0.000000e+00> : vector<16x128xf32>
    %102 = tpu.matmul %100, %101, %cst_39 {dimension_numbers = #tpu.dot_dimension_numbers<[1], [0], [0], [1], [0, 0, 1, 1], [], []>} : vector<16x128xbf16>, vector<128x128xbf16>, vector<16x128xf32> -> vector<16x128xf32>
    %103 = vector.broadcast %62 : vector<1x128xf32> to vector<16x128xf32>
    %104 = arith.addf %102, %103 : vector<16x128xf32>
    %105 = vector.broadcast %56 : vector<16x1xf32> to vector<16x128xf32>
    %106 = arith.mulf %104, %105 : vector<16x128xf32>
    %cst_40 = arith.constant dense<0.000000e+00> : vector<128xf32>
    %107 = vector.multi_reduction <add>, %106, %cst_40 [0] : vector<16x128xf32> to vector<128xf32>
    %108 = vector.shape_cast %107 : vector<128xf32> to vector<1x128xf32>
    %109 = vector.broadcast %58 : f32 to vector<1x128xf32>
    %110 = arith.mulf %108, %109 : vector<1x128xf32>
    %111 = vector.broadcast %110 : vector<1x128xf32> to vector<16x128xf32>
    %112 = arith.subf %104, %111 : vector<16x128xf32>
    %113 = vector.broadcast %56 : vector<16x1xf32> to vector<16x128xf32>
    %114 = arith.mulf %112, %113 : vector<16x128xf32>
    %115 = arith.mulf %114, %114 : vector<16x128xf32>
    %cst_41 = arith.constant dense<0.000000e+00> : vector<128xf32>
    %116 = vector.multi_reduction <add>, %115, %cst_41 [0] : vector<16x128xf32> to vector<128xf32>
    %117 = vector.shape_cast %116 : vector<128xf32> to vector<1x128xf32>
    %118 = vector.broadcast %58 : f32 to vector<1x128xf32>
    %119 = arith.mulf %117, %118 : vector<1x128xf32>
    %120 = vector.broadcast %110 : vector<1x128xf32> to vector<16x128xf32>
    %121 = arith.subf %104, %120 : vector<16x128xf32>
    %122 = vector.broadcast %63 : vector<1x128xf32> to vector<16x128xf32>
    %123 = arith.mulf %122, %121 : vector<16x128xf32>
    %cst_42 = arith.constant 9.99999974E-6 : f32
    %124 = vector.broadcast %cst_42 : f32 to vector<1x128xf32>
    %125 = arith.addf %119, %124 : vector<1x128xf32>
    %126 = math.rsqrt %125 : vector<1x128xf32>
    %127 = vector.broadcast %126 : vector<1x128xf32> to vector<16x128xf32>
    %128 = arith.mulf %123, %127 : vector<16x128xf32>
    %129 = vector.broadcast %64 : vector<1x128xf32> to vector<16x128xf32>
    %130 = arith.addf %128, %129 : vector<16x128xf32>
    %cst_43 = arith.constant 0.000000e+00 : f32
    %131 = vector.broadcast %cst_43 : f32 to vector<16x128xf32>
    %132 = arith.maximumf %130, %131 : vector<16x128xf32>
    %133 = vector.broadcast %56 : vector<16x1xf32> to vector<16x128xf32>
    %134 = arith.mulf %132, %133 : vector<16x128xf32>
    %cst_44 = arith.constant dense<0.000000e+00> : vector<128xf32>
    %135 = vector.multi_reduction <add>, %134, %cst_44 [0] : vector<16x128xf32> to vector<128xf32>
    %136 = vector.shape_cast %135 : vector<128xf32> to vector<1x128xf32>
    %137 = vector.broadcast %58 : f32 to vector<1x128xf32>
    %138 = arith.mulf %136, %137 : vector<1x128xf32>
    %139 = vector.broadcast %138 : vector<1x128xf32> to vector<16x128xf32>
    %140 = arith.subf %132, %139 : vector<16x128xf32>
    %141 = vector.broadcast %56 : vector<16x1xf32> to vector<16x128xf32>
    %142 = arith.mulf %140, %141 : vector<16x128xf32>
    %143 = arith.mulf %142, %142 : vector<16x128xf32>
    %cst_45 = arith.constant dense<0.000000e+00> : vector<128xf32>
    %144 = vector.multi_reduction <add>, %143, %cst_45 [0] : vector<16x128xf32> to vector<128xf32>
    %145 = vector.shape_cast %144 : vector<128xf32> to vector<1x128xf32>
    %146 = vector.broadcast %58 : f32 to vector<1x128xf32>
    %147 = arith.mulf %145, %146 : vector<1x128xf32>
    %148 = vector.broadcast %138 : vector<1x128xf32> to vector<16x128xf32>
    %149 = arith.subf %132, %148 : vector<16x128xf32>
    %150 = vector.broadcast %65 : vector<1x128xf32> to vector<16x128xf32>
    %151 = arith.mulf %150, %149 : vector<16x128xf32>
    %cst_46 = arith.constant 9.99999974E-6 : f32
    %152 = vector.broadcast %cst_46 : f32 to vector<1x128xf32>
    %153 = arith.addf %147, %152 : vector<1x128xf32>
    %154 = math.rsqrt %153 : vector<1x128xf32>
    %155 = vector.broadcast %154 : vector<1x128xf32> to vector<16x128xf32>
    %156 = arith.mulf %151, %155 : vector<16x128xf32>
    %157 = vector.broadcast %66 : vector<1x128xf32> to vector<16x128xf32>
    %158 = arith.addf %156, %157 : vector<16x128xf32>
    %c0_47 = arith.constant 0 : index
    %c0_48 = arith.constant 0 : index
    %c0_49 = arith.constant 0 : index
    %159 = vector.load %arg7[%c0_47, %c0_48, %c0_49] : memref<1x16x128xf32, #tpu.memory_space<vmem>>, vector<1x16x128xf32>
    %160 = vector.shape_cast %159 : vector<1x16x128xf32> to vector<16x128xf32>
    %161 = vector.shape_cast %158 : vector<16x128xf32> to vector<1x16x128xf32>
    tpu.vector_store %arg7[%c0_47, %c0_48, %c0_49], %161 {strides = array<i32>} : memref<1x16x128xf32, #tpu.memory_space<vmem>>, vector<1x16x128xf32>,
    return
  }
  func.func @transform_0(%arg0: i32, %arg1: memref<2xi32, #tpu.memory_space<smem>>) -> (i32, i32, i32, i32) {
    %c0_i32 = arith.constant 0 : i32
    %c0_i32_0 = arith.constant 0 : i32
    %c0_i32_1 = arith.constant 0 : i32
    %c0_i32_2 = arith.constant 0 : i32
    return %arg0, %c0_i32, %c0_i32_0, %c0_i32_1 : i32, i32, i32, i32
  }
  func.func @transform_1(%arg0: i32, %arg1: memref<2xi32, #tpu.memory_space<smem>>) -> (i32, i32, i32) {
    %c0_i32 = arith.constant 0 : i32
    %c0_i32_0 = arith.constant 0 : i32
    %c0_i32_1 = arith.constant 0 : i32
    return %arg0, %c0_i32, %c0_i32_0 : i32, i32, i32
  }
  func.func @transform_2(%arg0: i32, %arg1: memref<2xi32, #tpu.memory_space<smem>>) -> (i32, i32) {
    %c0_i32 = arith.constant 0 : i32
    %c0_i32_0 = arith.constant 0 : i32
    %c0_i32_1 = arith.constant 0 : i32
    return %c0_i32, %c0_i32_0 : i32, i32
  }
  func.func @transform_3(%arg0: i32, %arg1: memref<2xi32, #tpu.memory_space<smem>>) -> (i32, i32) {
    %c0_i32 = arith.constant 0 : i32
    %c0_i32_0 = arith.constant 0 : i32
    %c0_i32_1 = arith.constant 0 : i32
    return %c0_i32, %c0_i32_0 : i32, i32
  }
  func.func @transform_4(%arg0: i32, %arg1: memref<2xi32, #tpu.memory_space<smem>>) -> (i32, i32) {
    %c0_i32 = arith.constant 0 : i32
    %c0_i32_0 = arith.constant 0 : i32
    %c0_i32_1 = arith.constant 0 : i32
    return %c0_i32, %c0_i32_0 : i32, i32
  }
  func.func @transform_5(%arg0: i32, %arg1: memref<2xi32, #tpu.memory_space<smem>>) -> (i32, i32, i32) {
    %c0_i32 = arith.constant 0 : i32
    %c0_i32_0 = arith.constant 0 : i32
    %c0_i32_1 = arith.constant 0 : i32
    return %arg0, %c0_i32, %c0_i32_0 : i32, i32, i32
  }
}

</mosaic_0001>

<llo_original>
// kernel: tpu_custom_call.1
$region0: #{tpu_custom_call.1}
  #allocation0 [shape = 'u32[]', space=smem, size = 0x4, offset = 0x4, fixed_abs, tag = 'smem constant byte address 0x4 - core index']
  #allocation1 [shape = 'u32[72,128]{1,0:T(1,128)}', space=vmem, size = 0x9000, scoped, tag = 'internal scratch']
  #allocation2 [shape = 's32[1]{0}', space=sflag, size = 0x4, scoped, tag = 'scoped memory for tpu_custom_call.1']
  #allocation3 [shape = 'u8[512]{0}', space=smem, size = 0x200, scoped, tag = 'prefetched SMEM operand 0']
  %s0 = inlined_call_operand.vmem [shape: s32[2], index: 0, kind: input, shape index: {}]
  %s1 = inlined_call_operand.vmem [shape: s8[2,2,16,8], index: 1, kind: input, shape index: {}]
  %s2 = inlined_call_operand.hbm [shape: f32[2,16,128], index: 2, kind: input, shape index: {}]
  %s3 = inlined_call_operand.hbm [shape: bf16[128,128], index: 3, kind: input, shape index: {}]
  %s4 = inlined_call_operand.hbm [shape: bf16[128,128], index: 4, kind: input, shape index: {}]
  %s5 = inlined_call_operand.vmem [shape: f32[8,128], index: 5, kind: input, shape index: {}]
  %s6 = inlined_call_operand.hbm [shape: f32[2,16,128], index: 6, kind: output, shape index: {}]
  %s7 = sld [smem:[#allocation0]]
  $region65: #{tpu_custom_call.1} parent=0
    _
  %s9 = ssub.s32 1, %s7
  %s10 = scalar_select 0, %s9, %s7
  %s12 = sshll.u32 %s0, 4
  %s13 = int_to_ptr.vmem [resolvable:$true] %s12
  %15 = dma.vmem_to_smem %s13, 16, [#allocation3], [#allocation2]
  %17 = dma.done [#allocation2], 16
  %18 = sfence
  $region1: #{tpu_custom_call.1} parent=0
    #allocation4 [shape = 'u8[16384]{0}', space=vmem, size = 0x4000, scoped, tag = 'input window, operand 2']
    #allocation5 [shape = 's32[2]{0}', space=sflag, size = 0x8, scoped, tag = 'scoped memory for tpu_custom_call.1']
    #allocation6 [shape = 's32[2]{0}', space=sflag, size = 0x8, scoped, tag = 'scoped memory for tpu_custom_call.1']
    #allocation7 [shape = 'u8[32768]{0}', space=vmem, size = 0x8000, scoped, tag = 'input window, operand 3, single buffered']
    #allocation8 [shape = 's32[1]{0}', space=sflag, size = 0x4, scoped, tag = 'scoped memory for tpu_custom_call.1']
    #allocation9 [shape = 'u8[32768]{0}', space=vmem, size = 0x8000, scoped, tag = 'input window, operand 4, single buffered']
    #allocation10 [shape = 'u8[16384]{0}', space=vmem, size = 0x4000, scoped, tag = 'output window, operand 0']
    %19 = vsyncpa [#allocation5], 0
    %s20 = scalar_lea.sflag [#allocation5], 1
    %21 = vsyncpa %s20, 0
    %22 = vsyncpa [#allocation8], 0
    %23 = vsyncpa [#allocation6], 0
    %s24 = scalar_lea.sflag [#allocation6], 1
    %25 = vsyncpa %s24, 0
    loop: start=0, step=1, limit=4
    $region2: #{tpu_custom_call.1} parent=1 // loop_pre_header
      _
    $region3: #{tpu_custom_call.1} parent=1 // loop_header
      %s27 = sphi 0, %s31
      %p28 = scmp.ge.s32.totalorder %s27, 4
      %s37 = sphi 0, %s39
      %s40 = sphi 0, %s37
      %s41 = sphi 0, %s40
      %s57 = sphi 0, %s41
      %s63 = sphi 0, %s65
      %s66 = sphi 0, %s63
      %s67 = sphi 0, %s66
      %s83 = sphi 0, %s67
      %s87 = sphi 0, %s87
      %s89 = sphi 0, %s87
      %s90 = sphi 0, %s89
      %s104 = sphi 0, %s90
      %s108 = sphi 0, %s108
      %s110 = sphi 0, %s108
      %s111 = sphi 0, %s110
      %s125 = sphi 0, %s111
      %s129 = sphi 0, %s129
      %s131 = sphi 0, %s129
      %s132 = sphi 0, %s131
      %s146 = sphi 0, %s132
      %s152 = sphi 0, %s154
      %s155 = sphi 0, %s152
      %s156 = sphi 0, %s155
      %s172 = sphi 0, %s156
    $region4: #{tpu_custom_call.1} parent=1 // loop_header_branch
      %30 = sbr.rel (%p28) target = $region8
    $region5: #{tpu_custom_call.1} parent=1 // loop_body
      %s32 = ssub.s32 %s27, 1
      %s33 = ssub.s32 %s27, 2
      %s34 = sadd.s32 %s27, 1
      %s35 = ssub.s32 %s27, %s34
      %p36 = scmp.eq.s32.totalorder %s35, 0
      %s38 = sadd.s32 %s37, 1
      %s39 = scalar_select %p36, %s37, %s38
      %p42 = pneg %p36
      %p43 = scmp.eq.s32.totalorder %s27, 1
      %p44 = por %p42, %p43
      %p45 = scmp.ne.s32.totalorder %s37, %s40
      %p46 = scmp.eq.s32.totalorder %s27, 0
      %p47 = por %p45, %p46
      %p48 = scmp.ne.s32.totalorder %s37, %s40
      %p49 = scmp.eq.s32.totalorder %s32, 1
      %p50 = por %p48, %p49
      %p51 = scmp.ne.s32.totalorder %s40, %s41
      %p52 = scmp.eq.s32.totalorder %s32, 0
      %p53 = por %p51, %p52
      %p54 = scmp.ne.s32.totalorder %s40, %s41
      %p55 = scmp.eq.s32.totalorder %s33, 1
      %p56 = por %p54, %p55
      %p58 = scmp.ne.s32.totalorder %s41, %s57
      %p59 = scmp.eq.s32.totalorder %s33, 0
      %p60 = por %p58, %p59
      %s61 = ssub.s32 %s27, %s34
      %p62 = scmp.eq.s32.totalorder %s61, 0
      %s64 = sadd.s32 %s63, 1
      %s65 = scalar_select %p62, %s63, %s64
      %p68 = pneg %p62
      %p69 = scmp.eq.s32.totalorder %s27, 1
      %p70 = por %p68, %p69
      %p71 = scmp.ne.s32.totalorder %s63, %s66
      %p72 = scmp.eq.s32.totalorder %s27, 0
      %p73 = por %p71, %p72
      %p74 = scmp.ne.s32.totalorder %s63, %s66
      %p75 = scmp.eq.s32.totalorder %s32, 1
      %p76 = por %p74, %p75
      %p77 = scmp.ne.s32.totalorder %s66, %s67
      %p78 = scmp.eq.s32.totalorder %s32, 0
      %p79 = por %p77, %p78
      %p80 = scmp.ne.s32.totalorder %s66, %s67
      %p81 = scmp.eq.s32.totalorder %s33, 1
      %p82 = por %p80, %p81
      %p84 = scmp.ne.s32.totalorder %s67, %s83
      %p85 = scmp.eq.s32.totalorder %s33, 0
      %p86 = por %p84, %p85
      %s88 = sadd.s32 %s87, 1
      %p91 = scmp.eq.s32.totalorder %s27, 1
      %p92 = scmp.ne.s32.totalorder %s87, %s89
      %p93 = scmp.eq.s32.totalorder %s27, 0
      %p94 = por %p92, %p93
      %p95 = scmp.ne.s32.totalorder %s87, %s89
      %p96 = scmp.eq.s32.totalorder %s32, 1
      %p97 = por %p95, %p96
      %p98 = scmp.ne.s32.totalorder %s89, %s90
      %p99 = scmp.eq.s32.totalorder %s32, 0
      %p100 = por %p98, %p99
      %p101 = scmp.ne.s32.totalorder %s89, %s90
      %p102 = scmp.eq.s32.totalorder %s33, 1
      %p103 = por %p101, %p102
      %p105 = scmp.ne.s32.totalorder %s90, %s104
      %p106 = scmp.eq.s32.totalorder %s33, 0
      %p107 = por %p105, %p106
      %s109 = sadd.s32 %s108, 1
      %p112 = scmp.eq.s32.totalorder %s27, 1
      %p113 = scmp.ne.s32.totalorder %s108, %s110
      %p114 = scmp.eq.s32.totalorder %s27, 0
      %p115 = por %p113, %p114
      %p116 = scmp.ne.s32.totalorder %s108, %s110
      %p117 = scmp.eq.s32.totalorder %s32, 1
      %p118 = por %p116, %p117
      %p119 = scmp.ne.s32.totalorder %s110, %s111
      %p120 = scmp.eq.s32.totalorder %s32, 0
      %p121 = por %p119, %p120
      %p122 = scmp.ne.s32.totalorder %s110, %s111
      %p123 = scmp.eq.s32.totalorder %s33, 1
      %p124 = por %p122, %p123
      %p126 = scmp.ne.s32.totalorder %s111, %s125
      %p127 = scmp.eq.s32.totalorder %s33, 0
      %p128 = por %p126, %p127
      %s130 = sadd.s32 %s129, 1
      %p133 = scmp.eq.s32.totalorder %s27, 1
      %p134 = scmp.ne.s32.totalorder %s129, %s131
      %p135 = scmp.eq.s32.totalorder %s27, 0
      %p136 = por %p134, %p135
      %p137 = scmp.ne.s32.totalorder %s129, %s131
      %p138 = scmp.eq.s32.totalorder %s32, 1
      %p139 = por %p137, %p138
      %p140 = scmp.ne.s32.totalorder %s131, %s132
      %p141 = scmp.eq.s32.totalorder %s32, 0
      %p142 = por %p140, %p141
      %p143 = scmp.ne.s32.totalorder %s131, %s132
      %p144 = scmp.eq.s32.totalorder %s33, 1
      %p145 = por %p143, %p144
      %p147 = scmp.ne.s32.totalorder %s132, %s146
      %p148 = scmp.eq.s32.totalorder %s33, 0
      %p149 = por %p147, %p148
      %s150 = ssub.s32 %s27, %s34
      %p151 = scmp.eq.s32.totalorder %s150, 0
      %s153 = sadd.s32 %s152, 1
      %s154 = scalar_select %p151, %s152, %s153
      %p157 = pneg %p151
      %p158 = scmp.eq.s32.totalorder %s27, 1
      %p159 = por %p157, %p158
      %p160 = scmp.ne.s32.totalorder %s152, %s155
      %p161 = scmp.eq.s32.totalorder %s27, 0
      %p162 = por %p160, %p161
      %p163 = scmp.ne.s32.totalorder %s152, %s155
      %p164 = scmp.eq.s32.totalorder %s32, 1
      %p165 = por %p163, %p164
      %p166 = scmp.ne.s32.totalorder %s155, %s156
      %p167 = scmp.eq.s32.totalorder %s32, 0
      %p168 = por %p166, %p167
      %p169 = scmp.ne.s32.totalorder %s155, %s156
      %p170 = scmp.eq.s32.totalorder %s33, 1
      %p171 = por %p169, %p170
      %p173 = scmp.ne.s32.totalorder %s156, %s172
      %p174 = scmp.eq.s32.totalorder %s33, 0
      %p175 = por %p173, %p174
      %p176 = scmp.le.s32.totalorder 1, %s27
      %p177 = scmp.lt.s32.totalorder %s27, 3
      %p178 = pnand %p176, %p177
      %p179 = pneg %p178
      // Predicated region
      $region9: #{tpu_custom_call.1} parent=5 // pred_check
        _
      $region10: #{tpu_custom_call.1} parent=5 // pred_check_branch
        %181 = sbr.rel (%p178) target = $region12
      $region11: #{tpu_custom_call.1} parent=5 // pred_region
        %s182 = ssub.s32 %s27, 1
        // Predicated region
        $region13: #{tpu_custom_call.1} parent=11 // pred_check
          %p183 = pneg %p100
        $region14: #{tpu_custom_call.1} parent=11 // pred_check_branch
          %185 = sbr.rel (%p183) target = $region16
        $region15: #{tpu_custom_call.1} parent=11 // pred_region
          %187 = vsyncadd [#allocation8], 0
          %s188 = sshll.u32 %s3, 4
          %s189 = int_to_ptr.hbm [resolvable:$true] %s188
          %s190 = sshll.u32 [#allocation7], 4
          %s191 = int_to_ptr.vmem [resolvable:$true] %s190
          %196 = dma.hbm_to_vmem [thread:$0]  %s189, 1024, %s191, [#allocation8], 64, 64, 4
        $region16: #{tpu_custom_call.1} parent=11 // pred_fallthru
          _
        // Predicated region
        $region17: #{tpu_custom_call.1} parent=11 // pred_check
          %p197 = pneg %p121
        $region18: #{tpu_custom_call.1} parent=11 // pred_check_branch
          %199 = sbr.rel (%p197) target = $region20
        $region19: #{tpu_custom_call.1} parent=11 // pred_region
          %201 = vsyncadd [#allocation8], 0
          %s202 = sshll.u32 %s4, 4
          %s203 = int_to_ptr.hbm [resolvable:$true] %s202
          %s204 = sshll.u32 [#allocation9], 4
          %s205 = int_to_ptr.vmem [resolvable:$true] %s204
          %210 = dma.hbm_to_vmem [thread:$0]  %s203, 1024, %s205, [#allocation8], 64, 64, 4
        $region20: #{tpu_custom_call.1} parent=11 // pred_fallthru
          _
        // Predicated region
        $region21: #{tpu_custom_call.1} parent=11 // pred_check
          %p211 = pneg %p142
        $region22: #{tpu_custom_call.1} parent=11 // pred_check_branch
          %213 = sbr.rel (%p211) target = $region24
        $region23: #{tpu_custom_call.1} parent=11 // pred_region
          _
        $region24: #{tpu_custom_call.1} parent=11 // pred_fallthru
          _
      $region12: #{tpu_custom_call.1} parent=5 // pred_fallthru
        _
      %p214 = scmp.lt.s32.totalorder %s27, 2
      // Predicated region
      $region25: #{tpu_custom_call.1} parent=5 // pred_check
        %p215 = pneg %p214
      $region26: #{tpu_custom_call.1} parent=5 // pred_check_branch
        %217 = sbr.rel (%p215) target = $region28
      $region27: #{tpu_custom_call.1} parent=5 // pred_region
        // Predicated region
        $region29: #{tpu_custom_call.1} parent=27 // pred_check
          %p218 = pneg %p47
        $region30: #{tpu_custom_call.1} parent=27 // pred_check_branch
          %220 = sbr.rel (%p218) target = $region32
        $region31: #{tpu_custom_call.1} parent=27 // pred_region
          %p221 = scmp.lt.s32.totalorder %s27, 1
          %s222 = scalar_select %p221, %s27, 1
          %s223 = smul.addr %s222, 4
          %s224 = smul.addr %s223, 2
          %s225 = scalar_lea.vmem %s1, %s224
        $region32: #{tpu_custom_call.1} parent=27 // pred_fallthru
          _
        // Predicated region
        $region33: #{tpu_custom_call.1} parent=27 // pred_check
          %p226 = pneg %p73
        $region34: #{tpu_custom_call.1} parent=27 // pred_check_branch
          %228 = sbr.rel (%p226) target = $region36
        $region35: #{tpu_custom_call.1} parent=27 // pred_region
          %s229 = sand.u32 %s63, 1
          %s230 = scalar_lea.sflag [#allocation5], %s229
          %s231 = sand.u32 %s63, 1
          %s232 = smul.addr %s231, 16
          %s233 = scalar_lea.vmem [#allocation4], %s232
          %235 = vsyncadd %s230, 0
          %s236 = smul.addr %s27, 2
          %s237 = smul.addr %s236, 8
          %s238 = scalar_lea.hbm %s2, %s237
          %s239 = sshll.u32 %s238, 4
          %s240 = int_to_ptr.hbm [resolvable:$true] %s239
          %s241 = sshll.u32 %s233, 4
          %s242 = int_to_ptr.vmem [resolvable:$true] %s241
          %247 = dma.hbm_to_vmem [thread:$0]  %s240, 256, %s242, %s230, 128, 128, 8
        $region36: #{tpu_custom_call.1} parent=27 // pred_fallthru
          _
      $region28: #{tpu_custom_call.1} parent=5 // pred_fallthru
        _
      %p248 = scmp.le.s32.totalorder 1, %s27
      %p249 = scmp.lt.s32.totalorder %s27, 3
      %p250 = pnand %p248, %p249
      %p251 = pneg %p250
      // Predicated region
      $region37: #{tpu_custom_call.1} parent=5 // pred_check
        _
      $region38: #{tpu_custom_call.1} parent=5 // pred_check_branch
        %253 = sbr.rel (%p250) target = $region40
      $region39: #{tpu_custom_call.1} parent=5 // pred_region
        %s254 = ssub.s32 %s27, 1
        %s255 = sand.u32 %s66, 1
        %s256 = scalar_lea.sflag [#allocation5], %s255
        %s257 = sand.u32 %s66, 1
        %s258 = smul.addr %s257, 16
        %s259 = scalar_lea.vmem [#allocation4], %s258
        // Predicated region
        $region41: #{tpu_custom_call.1} parent=39 // pred_check
          %p260 = pneg %p79
        $region42: #{tpu_custom_call.1} parent=39 // pred_check_branch
          %262 = sbr.rel (%p260) target = $region44
        $region43: #{tpu_custom_call.1} parent=39 // pred_region
          %264 = dma.done %s256, 256
        $region44: #{tpu_custom_call.1} parent=39 // pred_fallthru
          _
        // Predicated region
        $region45: #{tpu_custom_call.1} parent=39 // pred_check
          %p265 = pneg %p100
        $region46: #{tpu_custom_call.1} parent=39 // pred_check_branch
          %267 = sbr.rel (%p265) target = $region48
        $region47: #{tpu_custom_call.1} parent=39 // pred_region
          %269 = dma.done [#allocation8], 1024
        $region48: #{tpu_custom_call.1} parent=39 // pred_fallthru
          _
        // Predicated region
        $region49: #{tpu_custom_call.1} parent=39 // pred_check
          %p270 = pneg %p121
        $region50: #{tpu_custom_call.1} parent=39 // pred_check_branch
          %272 = sbr.rel (%p270) target = $region52
        $region51: #{tpu_custom_call.1} parent=39 // pred_region
          %274 = dma.done [#allocation8], 1024
        $region52: #{tpu_custom_call.1} parent=39 // pred_fallthru
          _
        %p275 = scmp.lt.s32.totalorder %s32, 1
        %s276 = scalar_select %p275, %s32, 1
        %s277 = smul.addr %s276, 4
        %s278 = smul.addr %s277, 2
        %s279 = scalar_lea.vmem %s1, %s278
        %p280 = pneg %p53
        %p281 = pneg %p50
        %s282 = sand.u32 %s66, 1
        %s283 = scalar_lea.sflag [#allocation5], %s282
        %s284 = sand.u32 %s66, 1
        %s285 = smul.addr %s284, 16
        %s286 = scalar_lea.vmem [#allocation4], %s285
        %p287 = pneg %p79
        %p288 = pneg %p76
        %p289 = pneg %p100
        %p290 = pneg %p97
        %p291 = pneg %p121
        %p292 = pneg %p118
        %p293 = pneg %p142
        %p294 = pneg %p139
        %p295 = pneg %p168
        %p296 = pneg %p165
        %s297 = sand.u32 %s155, 1
        %s298 = scalar_lea.sflag [#allocation6], %s297
        %s299 = sand.u32 %s155, 1
        %s300 = smul.addr %s299, 16
        %s301 = scalar_lea.vmem [#allocation10], %s300
        %p302 = scmp.lt.s32.totalorder %s32, 1
        %s303 = scalar_select %p302, %s32, 1
        %s304 = smul.addr %s303, 4
        %s305 = smul.addr %s304, 2
        %s306 = scalar_lea.vmem %s1, %s305
        %v307 = vld [vmem:[%s259] sm:$0xff]
        %v308 = vld [vmem:[%s259 + $0x8] sm:$0xff]
        %v309 = vld [vmem:[%s306] sm:$0x3]
        %v310 = vld [vmem:[%s306 + $0x2] sm:$0x3]
        %v311 = vunpack.c.0.s8 %v309
        %v312 = vunpack.c.0.s8 %v310
        %v313 = vcvt.s32.f32 %v311
        %v314 = vcvt.s32.f32 %v312
        %v315 = vld [vmem:[%s259] sm:$0xff]
        %v316 = vperm.slane %v313, 0
        %v317 = vlaneseq
        %v318 = vshrl.u32 %v317, 7
        %320 = vset.pattern.permute.xlu0 %v318
        %321 = vperm.xlu0 %320, %v316
        %v322 = vpop.permute.xlu0 %321
        %v323 = vperm.slane %v313, 1
        %v324 = vlaneseq
        %v325 = vshrl.u32 %v324, 7
        %327 = vset.pattern.permute.xlu0 %v325
        %328 = vperm.xlu0 %327, %v323
        %v329 = vpop.permute.xlu0 %328
        %v330 = vperm.slane %v313, 2
        %v331 = vlaneseq
        %v332 = vshrl.u32 %v331, 7
        %334 = vset.pattern.permute.xlu0 %v332
        %335 = vperm.xlu0 %334, %v330
        %v336 = vpop.permute.xlu0 %335
        %v337 = vperm.slane %v313, 3
        %v338 = vlaneseq
        %v339 = vshrl.u32 %v338, 7
        %341 = vset.pattern.permute.xlu0 %v339
        %342 = vperm.xlu0 %341, %v337
        %v343 = vpop.permute.xlu0 %342
        %v344 = vperm.slane %v313, 4
        %v345 = vlaneseq
        %v346 = vshrl.u32 %v345, 7
        %348 = vset.pattern.permute.xlu0 %v346
        %349 = vperm.xlu0 %348, %v344
        %v350 = vpop.permute.xlu0 %349
        %v351 = vperm.slane %v313, 5
        %v352 = vlaneseq
        %v353 = vshrl.u32 %v352, 7
        %355 = vset.pattern.permute.xlu0 %v353
        %356 = vperm.xlu0 %355, %v351
        %v357 = vpop.permute.xlu0 %356
        %v358 = vperm.slane %v313, 6
        %v359 = vlaneseq
        %v360 = vshrl.u32 %v359, 7
        %362 = vset.pattern.permute.xlu0 %v360
        %363 = vperm.xlu0 %362, %v358
        %v364 = vpop.permute.xlu0 %363
        %v365 = vperm.slane %v313, 7
        %v366 = vlaneseq
        %v367 = vshrl.u32 %v366, 7
        %369 = vset.pattern.permute.xlu0 %v367
        %370 = vperm.xlu0 %369, %v365
        %v371 = vpop.permute.xlu0 %370
        %v372 = vperm.slane %v314, 0
        %v373 = vlaneseq
        %v374 = vshrl.u32 %v373, 7
        %376 = vset.pattern.permute.xlu0 %v374
        %377 = vperm.xlu0 %376, %v372
        %v378 = vpop.permute.xlu0 %377
        %v379 = vperm.slane %v314, 1
        %v380 = vlaneseq
        %v381 = vshrl.u32 %v380, 7
        %383 = vset.pattern.permute.xlu0 %v381
        %384 = vperm.xlu0 %383, %v379
        %v385 = vpop.permute.xlu0 %384
        %v386 = vperm.slane %v314, 2
        %v387 = vlaneseq
        %v388 = vshrl.u32 %v387, 7
        %390 = vset.pattern.permute.xlu0 %v388
        %391 = vperm.xlu0 %390, %v386
        %v392 = vpop.permute.xlu0 %391
        %v393 = vperm.slane %v314, 3
        %v394 = vlaneseq
        %v395 = vshrl.u32 %v394, 7
        %397 = vset.pattern.permute.xlu0 %v395
        %398 = vperm.xlu0 %397, %v393
        %v399 = vpop.permute.xlu0 %398
        %v400 = vperm.slane %v314, 4
        %v401 = vlaneseq
        %v402 = vshrl.u32 %v401, 7
        %404 = vset.pattern.permute.xlu0 %v402
        %405 = vperm.xlu0 %404, %v400
        %v406 = vpop.permute.xlu0 %405
        %v407 = vperm.slane %v314, 5
        %v408 = vlaneseq
        %v409 = vshrl.u32 %v408, 7
        %411 = vset.pattern.permute.xlu0 %v409
        %412 = vperm.xlu0 %411, %v407
        %v413 = vpop.permute.xlu0 %412
        %v414 = vperm.slane %v314, 6
        %v415 = vlaneseq
        %v416 = vshrl.u32 %v415, 7
        %418 = vset.pattern.permute.xlu0 %v416
        %419 = vperm.xlu0 %418, %v414
        %v420 = vpop.permute.xlu0 %419
        %v421 = vperm.slane %v314, 7
        %v422 = vlaneseq
        %v423 = vshrl.u32 %v422, 7
        %425 = vset.pattern.permute.xlu0 %v423
        %426 = vperm.xlu0 %425, %v421
        %v427 = vpop.permute.xlu0 %426
        %vm428 = vcmp.gt.f32.partialorder %v322, 0.0
        %vm429 = vcmp.gt.f32.partialorder %v329, 0.0
        %vm430 = vcmp.gt.f32.partialorder %v336, 0.0
        %vm431 = vcmp.gt.f32.partialorder %v343, 0.0
        %vm432 = vcmp.gt.f32.partialorder %v350, 0.0
        %vm433 = vcmp.gt.f32.partialorder %v357, 0.0
        %vm434 = vcmp.gt.f32.partialorder %v364, 0.0
        %vm435 = vcmp.gt.f32.partialorder %v371, 0.0
        %vm436 = vcmp.gt.f32.partialorder %v378, 0.0
        %vm437 = vcmp.gt.f32.partialorder %v385, 0.0
        %vm438 = vcmp.gt.f32.partialorder %v392, 0.0
        %vm439 = vcmp.gt.f32.partialorder %v399, 0.0
        %vm440 = vcmp.gt.f32.partialorder %v406, 0.0
        %vm441 = vcmp.gt.f32.partialorder %v413, 0.0
        %vm442 = vcmp.gt.f32.partialorder %v420, 0.0
        %vm443 = vcmp.gt.f32.partialorder %v427, 0.0
        %v444 = vsel %vm428, 1, 0
        %v445 = vsel %vm429, 1, 0
        %v446 = vsel %vm430, 1, 0
        %v447 = vsel %vm431, 1, 0
        %v448 = vsel %vm432, 1, 0
        %v449 = vsel %vm433, 1, 0
        %v450 = vsel %vm434, 1, 0
        %v451 = vsel %vm435, 1, 0
        %v452 = vsel %vm436, 1, 0
        %v453 = vsel %vm437, 1, 0
        %v454 = vsel %vm438, 1, 0
        %v455 = vsel %vm439, 1, 0
        %v456 = vsel %vm440, 1, 0
        %v457 = vsel %vm441, 1, 0
        %v458 = vsel %vm442, 1, 0
        %v459 = vsel %vm443, 1, 0
        %vm460 = vcmp.eq.s32.totalorder %v444, 1
        %vm461 = vcmp.eq.s32.totalorder %v445, 1
        %vm462 = vcmp.eq.s32.totalorder %v446, 1
        %vm463 = vcmp.eq.s32.totalorder %v447, 1
        %vm464 = vcmp.eq.s32.totalorder %v448, 1
        %vm465 = vcmp.eq.s32.totalorder %v449, 1
        %vm466 = vcmp.eq.s32.totalorder %v450, 1
        %vm467 = vcmp.eq.s32.totalorder %v451, 1
        %vm468 = vcmp.eq.s32.totalorder %v452, 1
        %vm469 = vcmp.eq.s32.totalorder %v453, 1
        %vm470 = vcmp.eq.s32.totalorder %v454, 1
        %vm471 = vcmp.eq.s32.totalorder %v455, 1
        %vm472 = vcmp.eq.s32.totalorder %v456, 1
        %vm473 = vcmp.eq.s32.totalorder %v457, 1
        %vm474 = vcmp.eq.s32.totalorder %v458, 1
        %vm475 = vcmp.eq.s32.totalorder %v459, 1
        %v476 = vsel %vm460, %v315, -1e+30
        %v477 = vsel %vm461, %v315, -1e+30
        %v478 = vsel %vm462, %v315, -1e+30
        %v479 = vsel %vm463, %v315, -1e+30
        %v480 = vsel %vm464, %v315, -1e+30
        %v481 = vsel %vm465, %v315, -1e+30
        %v482 = vsel %vm466, %v315, -1e+30
        %v483 = vsel %vm467, %v315, -1e+30
        %v484 = vsel %vm468, %v315, -1e+30
        %v485 = vsel %vm469, %v315, -1e+30
        %v486 = vsel %vm470, %v315, -1e+30
        %v487 = vsel %vm471, %v315, -1e+30
        %v488 = vsel %vm472, %v315, -1e+30
        %v489 = vsel %vm473, %v315, -1e+30
        %v490 = vsel %vm474, %v315, -1e+30
        %v491 = vsel %vm475, %v315, -1e+30
        %v492 = vrot.slane %v476, 4
        %v493 = vmax.f32 %v476, %v492
        %v494 = vrot.slane %v493, 2
        %v495 = vmax.f32 %v493, %v494
        %v496 = vrot.slane %v495, 1
        %v497 = vmax.f32 %v495, %v496
        %v498 = vrot.slane %v477, 4
        %v499 = vmax.f32 %v477, %v498
        %v500 = vrot.slane %v499, 2
        %v501 = vmax.f32 %v499, %v500
        %v502 = vrot.slane %v501, 1
        %v503 = vmax.f32 %v501, %v502
        %v504 = vrot.slane %v478, 4
        %v505 = vmax.f32 %v478, %v504
        %v506 = vrot.slane %v505, 2
        %v507 = vmax.f32 %v505, %v506
        %v508 = vrot.slane %v507, 1
        %v509 = vmax.f32 %v507, %v508
        %v510 = vrot.slane %v479, 4
        %v511 = vmax.f32 %v479, %v510
        %v512 = vrot.slane %v511, 2
        %v513 = vmax.f32 %v511, %v512
        %v514 = vrot.slane %v513, 1
        %v515 = vmax.f32 %v513, %v514
        %v516 = vrot.slane %v480, 4
        %v517 = vmax.f32 %v480, %v516
        %v518 = vrot.slane %v517, 2
        %v519 = vmax.f32 %v517, %v518
        %v520 = vrot.slane %v519, 1
        %v521 = vmax.f32 %v519, %v520
        %v522 = vrot.slane %v481, 4
        %v523 = vmax.f32 %v481, %v522
        %v524 = vrot.slane %v523, 2
        %v525 = vmax.f32 %v523, %v524
        %v526 = vrot.slane %v525, 1
        %v527 = vmax.f32 %v525, %v526
        %v528 = vrot.slane %v482, 4
        %v529 = vmax.f32 %v482, %v528
        %v530 = vrot.slane %v529, 2
        %v531 = vmax.f32 %v529, %v530
        %v532 = vrot.slane %v531, 1
        %v533 = vmax.f32 %v531, %v532
        %v534 = vrot.slane %v483, 4
        %v535 = vmax.f32 %v483, %v534
        %v536 = vrot.slane %v535, 2
        %v537 = vmax.f32 %v535, %v536
        %v538 = vrot.slane %v537, 1
        %v539 = vmax.f32 %v537, %v538
        %v540 = vrot.slane %v484, 4
        %v541 = vmax.f32 %v484, %v540
        %v542 = vrot.slane %v541, 2
        %v543 = vmax.f32 %v541, %v542
        %v544 = vrot.slane %v543, 1
        %v545 = vmax.f32 %v543, %v544
        %v546 = vrot.slane %v485, 4
        %v547 = vmax.f32 %v485, %v546
        %v548 = vrot.slane %v547, 2
        %v549 = vmax.f32 %v547, %v548
        %v550 = vrot.slane %v549, 1
        %v551 = vmax.f32 %v549, %v550
        %v552 = vrot.slane %v486, 4
        %v553 = vmax.f32 %v486, %v552
        %v554 = vrot.slane %v553, 2
        %v555 = vmax.f32 %v553, %v554
        %v556 = vrot.slane %v555, 1
        %v557 = vmax.f32 %v555, %v556
        %v558 = vrot.slane %v487, 4
        %v559 = vmax.f32 %v487, %v558
        %v560 = vrot.slane %v559, 2
        %v561 = vmax.f32 %v559, %v560
        %v562 = vrot.slane %v561, 1
        %v563 = vmax.f32 %v561, %v562
        %v564 = vrot.slane %v488, 4
        %v565 = vmax.f32 %v488, %v564
        %v566 = vrot.slane %v565, 2
        %v567 = vmax.f32 %v565, %v566
        %v568 = vrot.slane %v567, 1
        %v569 = vmax.f32 %v567, %v568
        %v570 = vrot.slane %v489, 4
        %v571 = vmax.f32 %v489, %v570
        %v572 = vrot.slane %v571, 2
        %v573 = vmax.f32 %v571, %v572
        %v574 = vrot.slane %v573, 1
        %v575 = vmax.f32 %v573, %v574
        %v576 = vrot.slane %v490, 4
        %v577 = vmax.f32 %v490, %v576
        %v578 = vrot.slane %v577, 2
        %v579 = vmax.f32 %v577, %v578
        %v580 = vrot.slane %v579, 1
        %v581 = vmax.f32 %v579, %v580
        %v582 = vrot.slane %v491, 4
        %v583 = vmax.f32 %v491, %v582
        %v584 = vrot.slane %v583, 2
        %v585 = vmax.f32 %v583, %v584
        %v586 = vrot.slane %v585, 1
        %v587 = vmax.f32 %v585, %v586
        %v588 = vmax.f32 %v497, -1e+30
        %v589 = vmax.f32 %v503, -1e+30
        %v590 = vmax.f32 %v509, -1e+30
        %v591 = vmax.f32 %v515, -1e+30
        %v592 = vmax.f32 %v521, -1e+30
        %v593 = vmax.f32 %v527, -1e+30
        %v594 = vmax.f32 %v533, -1e+30
        %v595 = vmax.f32 %v539, -1e+30
        %v596 = vmax.f32 %v545, -1e+30
        %v597 = vmax.f32 %v551, -1e+30
        %v598 = vmax.f32 %v557, -1e+30
        %v599 = vmax.f32 %v563, -1e+30
        %v600 = vmax.f32 %v569, -1e+30
        %v601 = vmax.f32 %v575, -1e+30
        %v602 = vmax.f32 %v581, -1e+30
        %v603 = vmax.f32 %v587, -1e+30
        %s604 = scalar_lea.vmem %s306, 4
        %v605 = vld [vmem:[%s604] sm:$0x3]
        %v606 = vld [vmem:[%s604 + $0x2] sm:$0x3]
        %v607 = vunpack.c.0.s8 %v605
        %v608 = vunpack.c.0.s8 %v606
        %v609 = vcvt.s32.f32 %v607
        %v610 = vcvt.s32.f32 %v608
        %s611 = scalar_lea.vmem %s259, 8 [#allocation4]
        %v612 = vld [vmem:[%s611] sm:$0xff]
        %v613 = vperm.slane %v609, 0
        %v614 = vlaneseq
        %v615 = vshrl.u32 %v614, 7
        %617 = vset.pattern.permute.xlu0 %v615
        %618 = vperm.xlu0 %617, %v613
        %v619 = vpop.permute.xlu0 %618
        %v620 = vperm.slane %v609, 1
        %v621 = vlaneseq
        %v622 = vshrl.u32 %v621, 7
        %624 = vset.pattern.permute.xlu0 %v622
        %625 = vperm.xlu0 %624, %v620
        %v626 = vpop.permute.xlu0 %625
        %v627 = vperm.slane %v609, 2
        %v628 = vlaneseq
        %v629 = vshrl.u32 %v628, 7
        %631 = vset.pattern.permute.xlu0 %v629
        %632 = vperm.xlu0 %631, %v627
        %v633 = vpop.permute.xlu0 %632
        %v634 = vperm.slane %v609, 3
        %v635 = vlaneseq
        %v636 = vshrl.u32 %v635, 7
        %638 = vset.pattern.permute.xlu0 %v636
        %639 = vperm.xlu0 %638, %v634
        %v640 = vpop.permute.xlu0 %639
        %v641 = vperm.slane %v609, 4
        %v642 = vlaneseq
        %v643 = vshrl.u32 %v642, 7
        %645 = vset.pattern.permute.xlu0 %v643
        %646 = vperm.xlu0 %645, %v641
        %v647 = vpop.permute.xlu0 %646
        %v648 = vperm.slane %v609, 5
        %v649 = vlaneseq
        %v650 = vshrl.u32 %v649, 7
        %652 = vset.pattern.permute.xlu0 %v650
        %653 = vperm.xlu0 %652, %v648
        %v654 = vpop.permute.xlu0 %653
        %v655 = vperm.slane %v609, 6
        %v656 = vlaneseq
        %v657 = vshrl.u32 %v656, 7
        %659 = vset.pattern.permute.xlu0 %v657
        %660 = vperm.xlu0 %659, %v655
        %v661 = vpop.permute.xlu0 %660
        %v662 = vperm.slane %v609, 7
        %v663 = vlaneseq
        %v664 = vshrl.u32 %v663, 7
        %666 = vset.pattern.permute.xlu0 %v664
        %667 = vperm.xlu0 %666, %v662
        %v668 = vpop.permute.xlu0 %667
        %v669 = vperm.slane %v610, 0
        %v670 = vlaneseq
        %v671 = vshrl.u32 %v670, 7
        %673 = vset.pattern.permute.xlu0 %v671
        %674 = vperm.xlu0 %673, %v669
        %v675 = vpop.permute.xlu0 %674
        %v676 = vperm.slane %v610, 1
        %v677 = vlaneseq
        %v678 = vshrl.u32 %v677, 7
        %680 = vset.pattern.permute.xlu0 %v678
        %681 = vperm.xlu0 %680, %v676
        %v682 = vpop.permute.xlu0 %681
        %v683 = vperm.slane %v610, 2
        %v684 = vlaneseq
        %v685 = vshrl.u32 %v684, 7
        %687 = vset.pattern.permute.xlu0 %v685
        %688 = vperm.xlu0 %687, %v683
        %v689 = vpop.permute.xlu0 %688
        %v690 = vperm.slane %v610, 3
        %v691 = vlaneseq
        %v692 = vshrl.u32 %v691, 7
        %694 = vset.pattern.permute.xlu0 %v692
        %695 = vperm.xlu0 %694, %v690
        %v696 = vpop.permute.xlu0 %695
        %v697 = vperm.slane %v610, 4
        %v698 = vlaneseq
        %v699 = vshrl.u32 %v698, 7
        %701 = vset.pattern.permute.xlu0 %v699
        %702 = vperm.xlu0 %701, %v697
        %v703 = vpop.permute.xlu0 %702
        %v704 = vperm.slane %v610, 5
        %v705 = vlaneseq
        %v706 = vshrl.u32 %v705, 7
        %708 = vset.pattern.permute.xlu0 %v706
        %709 = vperm.xlu0 %708, %v704
        %v710 = vpop.permute.xlu0 %709
        %v711 = vperm.slane %v610, 6
        %v712 = vlaneseq
        %v713 = vshrl.u32 %v712, 7
        %715 = vset.pattern.permute.xlu0 %v713
        %716 = vperm.xlu0 %715, %v711
        %v717 = vpop.permute.xlu0 %716
        %v718 = vperm.slane %v610, 7
        %v719 = vlaneseq
        %v720 = vshrl.u32 %v719, 7
        %722 = vset.pattern.permute.xlu0 %v720
        %723 = vperm.xlu0 %722, %v718
        %v724 = vpop.permute.xlu0 %723
        %vm725 = vcmp.gt.f32.partialorder %v619, 0.0
        %vm726 = vcmp.gt.f32.partialorder %v626, 0.0
        %vm727 = vcmp.gt.f32.partialorder %v633, 0.0
        %vm728 = vcmp.gt.f32.partialorder %v640, 0.0
        %vm729 = vcmp.gt.f32.partialorder %v647, 0.0
        %vm730 = vcmp.gt.f32.partialorder %v654, 0.0
        %vm731 = vcmp.gt.f32.partialorder %v661, 0.0
        %vm732 = vcmp.gt.f32.partialorder %v668, 0.0
        %vm733 = vcmp.gt.f32.partialorder %v675, 0.0
        %vm734 = vcmp.gt.f32.partialorder %v682, 0.0
        %vm735 = vcmp.gt.f32.partialorder %v689, 0.0
        %vm736 = vcmp.gt.f32.partialorder %v696, 0.0
        %vm737 = vcmp.gt.f32.partialorder %v703, 0.0
        %vm738 = vcmp.gt.f32.partialorder %v710, 0.0
        %vm739 = vcmp.gt.f32.partialorder %v717, 0.0
        %vm740 = vcmp.gt.f32.partialorder %v724, 0.0
        %v741 = vsel %vm725, 1, 0
        %v742 = vsel %vm726, 1, 0
        %v743 = vsel %vm727, 1, 0
        %v744 = vsel %vm728, 1, 0
        %v745 = vsel %vm729, 1, 0
        %v746 = vsel %vm730, 1, 0
        %v747 = vsel %vm731, 1, 0
        %v748 = vsel %vm732, 1, 0
        %v749 = vsel %vm733, 1, 0
        %v750 = vsel %vm734, 1, 0
        %v751 = vsel %vm735, 1, 0
        %v752 = vsel %vm736, 1, 0
        %v753 = vsel %vm737, 1, 0
        %v754 = vsel %vm738, 1, 0
        %v755 = vsel %vm739, 1, 0
        %v756 = vsel %vm740, 1, 0
        %vm757 = vcmp.eq.s32.totalorder %v741, 1
        %vm758 = vcmp.eq.s32.totalorder %v742, 1
        %vm759 = vcmp.eq.s32.totalorder %v743, 1
        %vm760 = vcmp.eq.s32.totalorder %v744, 1
        %vm761 = vcmp.eq.s32.totalorder %v745, 1
        %vm762 = vcmp.eq.s32.totalorder %v746, 1
        %vm763 = vcmp.eq.s32.totalorder %v747, 1
        %vm764 = vcmp.eq.s32.totalorder %v748, 1
        %vm765 = vcmp.eq.s32.totalorder %v749, 1
        %vm766 = vcmp.eq.s32.totalorder %v750, 1
        %vm767 = vcmp.eq.s32.totalorder %v751, 1
        %vm768 = vcmp.eq.s32.totalorder %v752, 1
        %vm769 = vcmp.eq.s32.totalorder %v753, 1
        %vm770 = vcmp.eq.s32.totalorder %v754, 1
        %vm771 = vcmp.eq.s32.totalorder %v755, 1
        %vm772 = vcmp.eq.s32.totalorder %v756, 1
        %v773 = vsel %vm757, %v612, -1e+30
        %v774 = vsel %vm758, %v612, -1e+30
        %v775 = vsel %vm759, %v612, -1e+30
        %v776 = vsel %vm760, %v612, -1e+30
        %v777 = vsel %vm761, %v612, -1e+30
        %v778 = vsel %vm762, %v612, -1e+30
        %v779 = vsel %vm763, %v612, -1e+30
        %v780 = vsel %vm764, %v612, -1e+30
        %v781 = vsel %vm765, %v612, -1e+30
        %v782 = vsel %vm766, %v612, -1e+30
        %v783 = vsel %vm767, %v612, -1e+30
        %v784 = vsel %vm768, %v612, -1e+30
        %v785 = vsel %vm769, %v612, -1e+30
        %v786 = vsel %vm770, %v612, -1e+30
        %v787 = vsel %vm771, %v612, -1e+30
        %v788 = vsel %vm772, %v612, -1e+30
        %v789 = vrot.slane %v773, 4
        %v790 = vmax.f32 %v773, %v789
        %v791 = vrot.slane %v790, 2
        %v792 = vmax.f32 %v790, %v791
        %v793 = vrot.slane %v792, 1
        %v794 = vmax.f32 %v792, %v793
        %v795 = vrot.slane %v774, 4
        %v796 = vmax.f32 %v774, %v795
        %v797 = vrot.slane %v796, 2
        %v798 = vmax.f32 %v796, %v797
        %v799 = vrot.slane %v798, 1
        %v800 = vmax.f32 %v798, %v799
        %v801 = vrot.slane %v775, 4
        %v802 = vmax.f32 %v775, %v801
        %v803 = vrot.slane %v802, 2
        %v804 = vmax.f32 %v802, %v803
        %v805 = vrot.slane %v804, 1
        %v806 = vmax.f32 %v804, %v805
        %v807 = vrot.slane %v776, 4
        %v808 = vmax.f32 %v776, %v807
        %v809 = vrot.slane %v808, 2
        %v810 = vmax.f32 %v808, %v809
        %v811 = vrot.slane %v810, 1
        %v812 = vmax.f32 %v810, %v811
        %v813 = vrot.slane %v777, 4
        %v814 = vmax.f32 %v777, %v813
        %v815 = vrot.slane %v814, 2
        %v816 = vmax.f32 %v814, %v815
        %v817 = vrot.slane %v816, 1
        %v818 = vmax.f32 %v816, %v817
        %v819 = vrot.slane %v778, 4
        %v820 = vmax.f32 %v778, %v819
        %v821 = vrot.slane %v820, 2
        %v822 = vmax.f32 %v820, %v821
        %v823 = vrot.slane %v822, 1
        %v824 = vmax.f32 %v822, %v823
        %v825 = vrot.slane %v779, 4
        %v826 = vmax.f32 %v779, %v825
        %v827 = vrot.slane %v826, 2
        %v828 = vmax.f32 %v826, %v827
        %v829 = vrot.slane %v828, 1
        %v830 = vmax.f32 %v828, %v829
        %v831 = vrot.slane %v780, 4
        %v832 = vmax.f32 %v780, %v831
        %v833 = vrot.slane %v832, 2
        %v834 = vmax.f32 %v832, %v833
        %v835 = vrot.slane %v834, 1
        %v836 = vmax.f32 %v834, %v835
        %v837 = vrot.slane %v781, 4
        %v838 = vmax.f32 %v781, %v837
        %v839 = vrot.slane %v838, 2
        %v840 = vmax.f32 %v838, %v839
        %v841 = vrot.slane %v840, 1
        %v842 = vmax.f32 %v840, %v841
        %v843 = vrot.slane %v782, 4
        %v844 = vmax.f32 %v782, %v843
        %v845 = vrot.slane %v844, 2
        %v846 = vmax.f32 %v844, %v845
        %v847 = vrot.slane %v846, 1
        %v848 = vmax.f32 %v846, %v847
        %v849 = vrot.slane %v783, 4
        %v850 = vmax.f32 %v783, %v849
        %v851 = vrot.slane %v850, 2
        %v852 = vmax.f32 %v850, %v851
        %v853 = vrot.slane %v852, 1
        %v854 = vmax.f32 %v852, %v853
        %v855 = vrot.slane %v784, 4
        %v856 = vmax.f32 %v784, %v855
        %v857 = vrot.slane %v856, 2
        %v858 = vmax.f32 %v856, %v857
        %v859 = vrot.slane %v858, 1
        %v860 = vmax.f32 %v858, %v859
        %v861 = vrot.slane %v785, 4
        %v862 = vmax.f32 %v785, %v861
        %v863 = vrot.slane %v862, 2
        %v864 = vmax.f32 %v862, %v863
        %v865 = vrot.slane %v864, 1
        %v866 = vmax.f32 %v864, %v865
        %v867 = vrot.slane %v786, 4
        %v868 = vmax.f32 %v786, %v867
        %v869 = vrot.slane %v868, 2
        %v870 = vmax.f32 %v868, %v869
        %v871 = vrot.slane %v870, 1
        %v872 = vmax.f32 %v870, %v871
        %v873 = vrot.slane %v787, 4
        %v874 = vmax.f32 %v787, %v873
        %v875 = vrot.slane %v874, 2
        %v876 = vmax.f32 %v874, %v875
        %v877 = vrot.slane %v876, 1
        %v878 = vmax.f32 %v876, %v877
        %v879 = vrot.slane %v788, 4
        %v880 = vmax.f32 %v788, %v879
        %v881 = vrot.slane %v880, 2
        %v882 = vmax.f32 %v880, %v881
        %v883 = vrot.slane %v882, 1
        %v884 = vmax.f32 %v882, %v883
        %v885 = vmax.f32 %v588, %v794
        %v886 = vmax.f32 %v589, %v800
        %v887 = vmax.f32 %v590, %v806
        %v888 = vmax.f32 %v591, %v812
        %v889 = vmax.f32 %v592, %v818
        %v890 = vmax.f32 %v593, %v824
        %v891 = vmax.f32 %v594, %v830
        %v892 = vmax.f32 %v595, %v836
        %v893 = vmax.f32 %v596, %v842
        %v894 = vmax.f32 %v597, %v848
        %v895 = vmax.f32 %v598, %v854
        %v896 = vmax.f32 %v599, %v860
        %v897 = vmax.f32 %v600, %v866
        %v898 = vmax.f32 %v601, %v872
        %v899 = vmax.f32 %v602, %v878
        %v900 = vmax.f32 %v603, %v884
        %vm901 = vcmp.gt.f32.partialorder %v885, -5e+29
        %vm902 = vcmp.gt.f32.partialorder %v886, -5e+29
        %vm903 = vcmp.gt.f32.partialorder %v887, -5e+29
        %vm904 = vcmp.gt.f32.partialorder %v888, -5e+29
        %vm905 = vcmp.gt.f32.partialorder %v889, -5e+29
        %vm906 = vcmp.gt.f32.partialorder %v890, -5e+29
        %vm907 = vcmp.gt.f32.partialorder %v891, -5e+29
        %vm908 = vcmp.gt.f32.partialorder %v892, -5e+29
        %vm909 = vcmp.gt.f32.partialorder %v893, -5e+29
        %vm910 = vcmp.gt.f32.partialorder %v894, -5e+29
        %vm911 = vcmp.gt.f32.partialorder %v895, -5e+29
        %vm912 = vcmp.gt.f32.partialorder %v896, -5e+29
        %vm913 = vcmp.gt.f32.partialorder %v897, -5e+29
        %vm914 = vcmp.gt.f32.partialorder %v898, -5e+29
        %vm915 = vcmp.gt.f32.partialorder %v899, -5e+29
        %vm916 = vcmp.gt.f32.partialorder %v900, -5e+29
        %v917 = vsel %vm901, %v885, 0.0
        %v918 = vsel %vm902, %v886, 0.0
        %v919 = vsel %vm903, %v887, 0.0
        %v920 = vsel %vm904, %v888, 0.0
        %v921 = vsel %vm905, %v889, 0.0
        %v922 = vsel %vm906, %v890, 0.0
        %v923 = vsel %vm907, %v891, 0.0
        %v924 = vsel %vm908, %v892, 0.0
        %v925 = vsel %vm909, %v893, 0.0
        %v926 = vsel %vm910, %v894, 0.0
        %v927 = vsel %vm911, %v895, 0.0
        %v928 = vsel %vm912, %v896, 0.0
        %v929 = vsel %vm913, %v897, 0.0
        %v930 = vsel %vm914, %v898, 0.0
        %v931 = vsel %vm915, %v899, 0.0
        %v932 = vsel %vm916, %v900, 0.0
        %vm949 = vcmask 1041409
        %v950 = vsel %vm949, %v918, %v917
        %vm951 = vcmask 1042434
        %v952 = vsel %vm951, %v919, %v950
        %vm953 = vcmask 1043459
        %v954 = vsel %vm953, %v920, %v952
        %vm955 = vcmask 1044484
        %v956 = vsel %vm955, %v921, %v954
        %vm957 = vcmask 1045509
        %v958 = vsel %vm957, %v922, %v956
        %vm959 = vcmask 1046534
        %v960 = vsel %vm959, %v923, %v958
        %vm961 = vcmask 1047559
        %v962 = vsel %vm961, %v924, %v960
        %v963 = vsel %vm949, %v926, %v925
        %v964 = vsel %vm951, %v927, %v963
        %v965 = vsel %vm953, %v928, %v964
        %v966 = vsel %vm955, %v929, %v965
        %v967 = vsel %vm957, %v930, %v966
        %v968 = vsel %vm959, %v931, %v967
        %v969 = vsel %vm961, %v932, %v968
        %v972 = vadd.f32 %v307, %v962
        %v973 = vadd.f32 %v308, %v969
        %s974 = sld [smem:[#allocation3 + %s32]]
        %v975 = vlaneseq
        %v976 = vshrl.u32 %v975, 7
        %v977 = vadd.s32 %v976, 8
        %v978 = vstv %s974
        %vm979 = vcmp.lt.s32.totalorder %v976, %v978
        %vm980 = vcmp.lt.s32.totalorder %v977, %v978
        %v981 = vsel %vm979, 1, 0
        %v982 = vsel %vm980, 1, 0
        %v983 = vcvt.s32.f32 %v981
        %v984 = vcvt.s32.f32 %v982
        %s985 = scvt.s32.f32 %s974
        %v986 = vstv %s985
        %v987 = vrcp.pop %v986
        %v988 = vmul.f32 %v986, %v987
        %v989 = vsub.f32 1.0, %v988
        %v990 = vmul.f32 %v987, %v989
        %v991 = vadd.f32 %v987, %v990
        %vm992 = vweird.f32 %v986
        %vm993 = vweird.f32 %v987
        %vm994 = vmor %vm992, %vm993
        %v995 = vsel %vm994, %v987, %v991
        %v996 = vand.u32 2147483647, %v986
        %vm997 = vcmp.eq.f32.partialorder %v996, 8.507059e+37
        %v998 = vand.u32 %v986, 2147483648
        %v999 = vor.u32 1.1754944e-38, %v998
        %v1000 = vsel %vm997, %v999, %v995
        %s1001 = vtos %v1000
        %v1002 = vld [vmem:[%s5] sm:$0x1]
        %v1003 = vld [vmem:[%s5 + $0x1] sm:$0x1]
        %v1004 = vld [vmem:[%s5 + $0x2] sm:$0x1]
        %v1005 = vld [vmem:[%s5 + $0x3] sm:$0x1]
        %v1006 = vld [vmem:[%s5 + $0x4] sm:$0x1]
        %v1007 = vld [vmem:[%s5 + $0x5] sm:$0x1]
        %v1008 = vld [vmem:[%s5 + $0x6] sm:$0x1]
        %v1009 = vld [vmem:[%s5 + $0x7] sm:$0x1]
        %v1010 = vpack.c.bf16 %v973, %v972
        %v1011 = vld [vmem:[#allocation7] sm:$0xf]
        %v1012 = vld [vmem:[#allocation7 + $0x4] sm:$0xf]
        %v1013 = vld [vmem:[#allocation7 + $0x8] sm:$0xf]
        %v1014 = vld [vmem:[#allocation7 + $0xc] sm:$0xf]
        %v1015 = vld [vmem:[#allocation7 + $0x10] sm:$0xf]
        %v1016 = vld [vmem:[#allocation7 + $0x14] sm:$0xf]
        %v1017 = vld [vmem:[#allocation7 + $0x18] sm:$0xf]
        %v1018 = vld [vmem:[#allocation7 + $0x1c] sm:$0xf]
        %v1019 = vld [vmem:[#allocation7 + $0x20] sm:$0xf]
        %v1020 = vld [vmem:[#allocation7 + $0x24] sm:$0xf]
        %v1021 = vld [vmem:[#allocation7 + $0x28] sm:$0xf]
        %v1022 = vld [vmem:[#allocation7 + $0x2c] sm:$0xf]
        %v1023 = vld [vmem:[#allocation7 + $0x30] sm:$0xf]
        %v1024 = vld [vmem:[#allocation7 + $0x34] sm:$0xf]
        %v1025 = vld [vmem:[#allocation7 + $0x38] sm:$0xf]
        %v1026 = vld [vmem:[#allocation7 + $0x3c] sm:$0xf]
        %v1027 = vperm.slane %v1002, 0
        %v1044 = vunpack.c.l.b16 %v1011
        %v1045 = vunpack.c.l.b16 %v1012
        %v1046 = vunpack.c.l.b16 %v1013
        %v1047 = vunpack.c.l.b16 %v1014
        %v1048 = vunpack.c.l.b16 %v1015
        %v1049 = vunpack.c.l.b16 %v1016
        %v1050 = vunpack.c.l.b16 %v1017
        %v1051 = vunpack.c.l.b16 %v1018
        %v1052 = vunpack.c.l.b16 %v1019
        %v1053 = vunpack.c.l.b16 %v1020
        %v1054 = vunpack.c.l.b16 %v1021
        %v1055 = vunpack.c.l.b16 %v1022
        %v1056 = vunpack.c.l.b16 %v1023
        %v1057 = vunpack.c.l.b16 %v1024
        %v1058 = vunpack.c.l.b16 %v1025
        %v1059 = vunpack.c.l.b16 %v1026
        %v1060 = vpack.c.b16 %v1045, %v1044
        %v1061 = vpack.c.b16 %v1047, %v1046
        %v1062 = vpack.c.b16 %v1049, %v1048
        %v1063 = vpack.c.b16 %v1051, %v1050
        %v1064 = vpack.c.b16 %v1053, %v1052
        %v1065 = vpack.c.b16 %v1055, %v1054
        %v1066 = vpack.c.b16 %v1057, %v1056
        %v1067 = vpack.c.b16 %v1059, %v1058
        %1076 = vmatpush.bf16.msra.mxu0 %v1067
        %1077 = vmatpush.bf16.msra.mxu0 %v1066
        %1078 = vmatpush.bf16.msra.mxu0 %v1065
        %1079 = vmatpush.bf16.msra.mxu0 %v1064
        %1080 = vmatpush.bf16.msra.mxu0 %v1063
        %1081 = vmatpush.bf16.msra.mxu0 %v1062
        %1082 = vmatpush.bf16.msra.mxu0 %v1061
        %1083 = vmatpush.bf16.msra.mxu0 %v1060
        %1084 = vmatmul.bf16.gmra.mxu0 %v1010
        %v1085 = vpop.f32.mrf.mxu0
        %v1086 = vadd.f32 %v1027, %v1085
        %v1087 = vpop.f32.mrf.mxu0
        %v1088 = vadd.f32 %v1027, %v1087
        %1089 = vdwg.mxu0
        %v1090 = vmul.f32 %v1086, %v983
        %v1091 = vmul.f32 %v1088, %v984
        %v1092 = vadd.f32 %v1090, %v1091
        %v1093 = vrot.slane %v1092, 4
        %v1094 = vadd.f32 %v1092, %v1093
        %v1095 = vrot.slane %v1094, 2
        %v1096 = vadd.f32 %v1094, %v1095
        %v1097 = vrot.slane %v1096, 1
        %v1098 = vadd.f32 %v1096, %v1097
        %v1099 = vstv %s1001
        %v1100 = vmul.f32 %v1098, %v1099
        %v1101 = vsub.f32 %v1086, %v1100
        %v1102 = vsub.f32 %v1088, %v1100
        %v1103 = vmul.f32 %v1101, %v983
        %v1104 = vmul.f32 %v1102, %v984
        %v1105 = vmul.f32 %v1103, %v1103
        %v1106 = vmul.f32 %v1104, %v1104
        %v1107 = vadd.f32 %v1105, %v1106
        %v1108 = vrot.slane %v1107, 4
        %v1109 = vadd.f32 %v1107, %v1108
        %v1110 = vrot.slane %v1109, 2
        %v1111 = vadd.f32 %v1109, %v1110
        %v1112 = vrot.slane %v1111, 1
        %v1113 = vadd.f32 %v1111, %v1112
        %v1114 = vmul.f32 %v1113, %v1099
        %v1115 = vperm.slane %v1003, 0
        %v1116 = vmul.f32 %v1115, %v1101
        %v1117 = vmul.f32 %v1115, %v1102
        %v1118 = vadd.f32 %v1114, 1e-05
        %v1119 = vrsqrt.pop %v1118
        %v1120 = vmul.f32 %v1119, %v1118
        %v1121 = vmul.f32 %v1120, %v1119
        %v1122 = vmul.f32 0.5, %v1121
        %v1123 = vsub.f32 1.5, %v1122
        %v1124 = vmul.f32 %v1119, %v1123
        %vm1125 = vweird.f32 %v1118
        %vm1126 = vweird.f32 %v1119
        %vm1127 = vmor %vm1125, %vm1126
        %v1128 = vsel %vm1127, %v1119, %v1124
        %v1129 = vmul.f32 %v1116, %v1128
        %v1130 = vmul.f32 %v1117, %v1128
        %v1131 = vperm.slane %v1004, 0
        %v1132 = vadd.f32 %v1129, %v1131
        %v1133 = vadd.f32 %v1130, %v1131
        %v1134 = vmax.f32 %v1132, 0.0
        %v1135 = vmax.f32 %v1133, 0.0
        %v1136 = vpack.c.bf16 %v1135, %v1134
        %v1137 = vld [vmem:[#allocation9] sm:$0xf]
        %v1138 = vld [vmem:[#allocation9 + $0x4] sm:$0xf]
        %v1139 = vld [vmem:[#allocation9 + $0x8] sm:$0xf]
        %v1140 = vld [vmem:[#allocation9 + $0xc] sm:$0xf]
        %v1141 = vld [vmem:[#allocation9 + $0x10] sm:$0xf]
        %v1142 = vld [vmem:[#allocation9 + $0x14] sm:$0xf]
        %v1143 = vld [vmem:[#allocation9 + $0x18] sm:$0xf]
        %v1144 = vld [vmem:[#allocation9 + $0x1c] sm:$0xf]
        %v1145 = vld [vmem:[#allocation9 + $0x20] sm:$0xf]
        %v1146 = vld [vmem:[#allocation9 + $0x24] sm:$0xf]
        %v1147 = vld [vmem:[#allocation9 + $0x28] sm:$0xf]
        %v1148 = vld [vmem:[#allocation9 + $0x2c] sm:$0xf]
        %v1149 = vld [vmem:[#allocation9 + $0x30] sm:$0xf]
        %v1150 = vld [vmem:[#allocation9 + $0x34] sm:$0xf]
        %v1151 = vld [vmem:[#allocation9 + $0x38] sm:$0xf]
        %v1152 = vld [vmem:[#allocation9 + $0x3c] sm:$0xf]
        %v1153 = vperm.slane %v1005, 0
        %v1170 = vunpack.c.l.b16 %v1137
        %v1171 = vunpack.c.l.b16 %v1138
        %v1172 = vunpack.c.l.b16 %v1139
        %v1173 = vunpack.c.l.b16 %v1140
        %v1174 = vunpack.c.l.b16 %v1141
        %v1175 = vunpack.c.l.b16 %v1142
        %v1176 = vunpack.c.l.b16 %v1143
        %v1177 = vunpack.c.l.b16 %v1144
        %v1178 = vunpack.c.l.b16 %v1145
        %v1179 = vunpack.c.l.b16 %v1146
        %v1180 = vunpack.c.l.b16 %v1147
        %v1181 = vunpack.c.l.b16 %v1148
        %v1182 = vunpack.c.l.b16 %v1149
        %v1183 = vunpack.c.l.b16 %v1150
        %v1184 = vunpack.c.l.b16 %v1151
        %v1185 = vunpack.c.l.b16 %v1152
        %v1186 = vpack.c.b16 %v1171, %v1170
        %v1187 = vpack.c.b16 %v1173, %v1172
        %v1188 = vpack.c.b16 %v1175, %v1174
        %v1189 = vpack.c.b16 %v1177, %v1176
        %v1190 = vpack.c.b16 %v1179, %v1178
        %v1191 = vpack.c.b16 %v1181, %v1180
        %v1192 = vpack.c.b16 %v1183, %v1182
        %v1193 = vpack.c.b16 %v1185, %v1184
        %1202 = vmatpush.bf16.msra.mxu0 %v1193
        %1203 = vmatpush.bf16.msra.mxu0 %v1192
        %1204 = vmatpush.bf16.msra.mxu0 %v1191
        %1205 = vmatpush.bf16.msra.mxu0 %v1190
        %1206 = vmatpush.bf16.msra.mxu0 %v1189
        %1207 = vmatpush.bf16.msra.mxu0 %v1188
        %1208 = vmatpush.bf16.msra.mxu0 %v1187
        %1209 = vmatpush.bf16.msra.mxu0 %v1186
        %1210 = vmatmul.bf16.gmra.mxu0 %v1136
        %v1211 = vpop.f32.mrf.mxu0
        %v1212 = vadd.f32 %v1153, %v1211
        %v1213 = vpop.f32.mrf.mxu0
        %v1214 = vadd.f32 %v1153, %v1213
        %1215 = vdwg.mxu0
        %v1216 = vmul.f32 %v1212, %v983
        %v1217 = vmul.f32 %v1214, %v984
        %v1218 = vadd.f32 %v1216, %v1217
        %v1219 = vrot.slane %v1218, 4
        %v1220 = vadd.f32 %v1218, %v1219
        %v1221 = vrot.slane %v1220, 2
        %v1222 = vadd.f32 %v1220, %v1221
        %v1223 = vrot.slane %v1222, 1
        %v1224 = vadd.f32 %v1222, %v1223
        %v1225 = vmul.f32 %v1224, %v1099
        %v1226 = vsub.f32 %v1212, %v1225
        %v1227 = vsub.f32 %v1214, %v1225
        %v1228 = vmul.f32 %v1226, %v983
        %v1229 = vmul.f32 %v1227, %v984
        %v1230 = vmul.f32 %v1228, %v1228
        %v1231 = vmul.f32 %v1229, %v1229
        %v1232 = vadd.f32 %v1230, %v1231
        %v1233 = vrot.slane %v1232, 4
        %v1234 = vadd.f32 %v1232, %v1233
        %v1235 = vrot.slane %v1234, 2
        %v1236 = vadd.f32 %v1234, %v1235
        %v1237 = vrot.slane %v1236, 1
        %v1238 = vadd.f32 %v1236, %v1237
        %v1239 = vmul.f32 %v1238, %v1099
        %v1240 = vperm.slane %v1006, 0
        %v1241 = vmul.f32 %v1240, %v1226
        %v1242 = vmul.f32 %v1240, %v1227
        %v1243 = vadd.f32 %v1239, 1e-05
        %v1244 = vrsqrt.pop %v1243
        %v1245 = vmul.f32 %v1244, %v1243
        %v1246 = vmul.f32 %v1245, %v1244
        %v1247 = vmul.f32 0.5, %v1246
        %v1248 = vsub.f32 1.5, %v1247
        %v1249 = vmul.f32 %v1244, %v1248
        %vm1250 = vweird.f32 %v1243
        %vm1251 = vweird.f32 %v1244
        %vm1252 = vmor %vm1250, %vm1251
        %v1253 = vsel %vm1252, %v1244, %v1249
        %v1254 = vmul.f32 %v1241, %v1253
        %v1255 = vmul.f32 %v1242, %v1253
        %v1256 = vperm.slane %v1007, 0
        %v1257 = vadd.f32 %v1254, %v1256
        %v1258 = vadd.f32 %v1255, %v1256
        %v1259 = vmax.f32 %v1257, 0.0
        %v1260 = vmax.f32 %v1258, 0.0
        %v1261 = vmul.f32 %v1259, %v983
        %v1262 = vmul.f32 %v1260, %v984
        %v1263 = vadd.f32 %v1261, %v1262
        %v1264 = vrot.slane %v1263, 4
        %v1265 = vadd.f32 %v1263, %v1264
        %v1266 = vrot.slane %v1265, 2
        %v1267 = vadd.f32 %v1265, %v1266
        %v1268 = vrot.slane %v1267, 1
        %v1269 = vadd.f32 %v1267, %v1268
        %v1270 = vmul.f32 %v1269, %v1099
        %v1271 = vsub.f32 %v1259, %v1270
        %v1272 = vsub.f32 %v1260, %v1270
        %v1273 = vmul.f32 %v1271, %v983
        %v1274 = vmul.f32 %v1272, %v984
        %v1275 = vmul.f32 %v1273, %v1273
        %v1276 = vmul.f32 %v1274, %v1274
        %v1277 = vadd.f32 %v1275, %v1276
        %v1278 = vrot.slane %v1277, 4
        %v1279 = vadd.f32 %v1277, %v1278
        %v1280 = vrot.slane %v1279, 2
        %v1281 = vadd.f32 %v1279, %v1280
        %v1282 = vrot.slane %v1281, 1
        %v1283 = vadd.f32 %v1281, %v1282
        %v1284 = vmul.f32 %v1283, %v1099
        %v1285 = vperm.slane %v1008, 0
        %v1286 = vmul.f32 %v1285, %v1271
        %v1287 = vmul.f32 %v1285, %v1272
        %v1288 = vadd.f32 %v1284, 1e-05
        %v1289 = vrsqrt.pop %v1288
        %v1290 = vmul.f32 %v1289, %v1288
        %v1291 = vmul.f32 %v1290, %v1289
        %v1292 = vmul.f32 0.5, %v1291
        %v1293 = vsub.f32 1.5, %v1292
        %v1294 = vmul.f32 %v1289, %v1293
        %vm1295 = vweird.f32 %v1288
        %vm1296 = vweird.f32 %v1289
        %vm1297 = vmor %vm1295, %vm1296
        %v1298 = vsel %vm1297, %v1289, %v1294
        %v1299 = vmul.f32 %v1286, %v1298
        %v1300 = vmul.f32 %v1287, %v1298
        %v1301 = vperm.slane %v1009, 0
        %v1302 = vadd.f32 %v1299, %v1301
        %v1303 = vadd.f32 %v1300, %v1301
        %1304 = vst [vmem:[%s301] sm:$0xff] %v1302
        %1305 = vst [vmem:[%s301 + $0x8] sm:$0xff] %v1303
        %s1306 = sand.u32 %s155, 1
        %s1307 = scalar_lea.sflag [#allocation6], %s1306
        %s1308 = sand.u32 %s155, 1
        %s1309 = smul.addr %s1308, 16
        %s1310 = scalar_lea.vmem [#allocation10], %s1309
        // Predicated region
        $region53: #{tpu_custom_call.1} parent=39 // pred_check
          %p1311 = pneg %p165
        $region54: #{tpu_custom_call.1} parent=39 // pred_check_branch
          %1313 = sbr.rel (%p1311) target = $region56
        $region55: #{tpu_custom_call.1} parent=39 // pred_region
          %1315 = vsyncadd %s1307, 0
          %s1316 = smul.addr %s32, 2
          %s1317 = smul.addr %s1316, 8
          %s1318 = scalar_lea.hbm %s6, %s1317
          %s1319 = sshll.u32 %s1310, 4
          %s1320 = int_to_ptr.vmem [resolvable:$true] %s1319
          %s1321 = sshll.u32 %s1318, 4
          %s1322 = int_to_ptr.hbm [resolvable:$true] %s1321
          %1327 = dma.vmem_to_hbm [thread:$0]  %s1320, 256, %s1322, %s1307, 128, 128, 8
        $region56: #{tpu_custom_call.1} parent=39 // pred_fallthru
          _
      $region40: #{tpu_custom_call.1} parent=5 // pred_fallthru
        _
      %p1328 = scmp.le.s32.totalorder 2, %s27
      // Predicated region
      $region57: #{tpu_custom_call.1} parent=5 // pred_check
        %p1329 = pneg %p1328
      $region58: #{tpu_custom_call.1} parent=5 // pred_check_branch
        %1331 = sbr.rel (%p1329) target = $region60
      $region59: #{tpu_custom_call.1} parent=5 // pred_region
        %s1332 = ssub.s32 %s27, 2
        // Predicated region
        $region61: #{tpu_custom_call.1} parent=59 // pred_check
          %p1333 = pneg %p171
        $region62: #{tpu_custom_call.1} parent=59 // pred_check_branch
          %1335 = sbr.rel (%p1333) target = $region64
        $region63: #{tpu_custom_call.1} parent=59 // pred_region
          %s1336 = sand.u32 %s156, 1
          %s1337 = scalar_lea.sflag [#allocation6], %s1336
          %s1338 = sand.u32 %s156, 1
          %s1339 = smul.addr %s1338, 16
          %s1340 = scalar_lea.vmem [#allocation10], %s1339
          %1342 = dma.done %s1337, 256
        $region64: #{tpu_custom_call.1} parent=59 // pred_fallthru
          _
      $region60: #{tpu_custom_call.1} parent=5 // pred_fallthru
        _
    $region6: #{tpu_custom_call.1} parent=1 // loop_footer
      %s31 = sadd.s32 1, %s27
    $region7: #{tpu_custom_call.1} parent=1 // loop_footer_branch
      %26 = sbr.rel target = $region3
    $region8: #{tpu_custom_call.1} parent=1 // loop_exit
      _
    %1343 = vsyncpa [#allocation5], 1
    %s1344 = scalar_lea.sflag [#allocation5], 1
    %1345 = vsyncpa %s1344, 1
    %1346 = vsyncpa [#allocation8], 1
    %1347 = vsyncpa [#allocation6], 1
    %s1348 = scalar_lea.sflag [#allocation6], 1
    %1349 = vsyncpa %s1348, 1

</llo_original>
